<compile_context>
chip_gen: v6e
topology: v6e:2x2x1
jax: 0.10.0
libtpu: 0.0.40
codegen_flags: <defaults>
</compile_context>

<pallas_src>
import jax
import jax.numpy as jnp
from jax.experimental import pallas as pl
from jax.experimental.pallas import tpu as pltpu

N_IN = 8
N_HID = 300
N_OUT = 4

H_PAD = 384      # 300 padded to 3*128 (lane-aligned hidden dim; do NOT round to 512)
OUT_PAD = 128    # lane-dense output slab; real Q-values live in [:, :N_OUT]
TM_MAX = 512     # cap so f32 activation temporaries stay well inside v5e's 16 MiB scoped VMEM


def _round_up(x, m):
    return ((x + m - 1) // m) * m


def _choose_tm(b):
    """Batch-adaptive batch-tile size (b is a static Python int at trace time)."""
    if b <= 64:
        # Latency path (get_action B=1, tiny eval batches): minimal sublane-aligned tile.
        return max(8, _round_up(b, 8))
    # Training-sized batches: big tiles, but keep >= 2 tiles when B > 128 so the
    # "parallel" grid axis can shard across v7x's two TensorCores.
    return max(128, min(TM_MAX, _round_up(pl.cdiv(b, 2), 128)))


def _policy_mlp_kernel(x_ref,
                       w1_ref, b1_ref,
                       w2_ref, b2_ref,
                       w3_ref, b3_ref,
                       w4_ref, b4_ref,
                       o_ref):
    """Whole forward pass for one batch tile: 3x (Linear+ReLU) + final Linear.

    Weights are bf16; activations are cast to bf16 before each MXU matmul and
    accumulated in f32 (preferred_element_type). Biases are f32. Output is
    stored as bf16 (halves writeback of the padded output slab).
    """
    x = x_ref[...].astype(jnp.bfloat16)

    h = jnp.dot(x, w1_ref[...], preferred_element_type=jnp.float32) + b1_ref[...]
    h = jnp.maximum(h, 0.0).astype(jnp.bfloat16)

    h = jnp.dot(h, w2_ref[...], preferred_element_type=jnp.float32) + b2_ref[...]
    h = jnp.maximum(h, 0.0).astype(jnp.bfloat16)

    h = jnp.dot(h, w3_ref[...], preferred_element_type=jnp.float32) + b3_ref[...]
    h = jnp.maximum(h, 0.0).astype(jnp.bfloat16)

    out = jnp.dot(h, w4_ref[...], preferred_element_type=jnp.float32) + b4_ref[...]
    o_ref[...] = out.astype(o_ref.dtype)


@jax.jit
def policy_forward(x, prepared):
    """x: (B, 8) float32 -> (B, 4) float32 Q-values."""
    w1, b1, w2, b2, w3, b3, w4, b4 = prepared

    b = x.shape[0]
    tm = _choose_tm(b)
    n_tiles = pl.cdiv(b, tm)
    b_pad = n_tiles * tm
    if b_pad != b:
        # Pad the batch so every grid step sees a full, aligned (tm, 8) tile.
        x = jnp.pad(x, ((0, b_pad - b), (0, 0)))

    resident = lambda i: (0, 0)  # weights/biases: same block every step -> DMA'd once

    # Advisory cost estimate: kernel is tiny and overhead-dominated; this lets
    # XLA overlap it with surrounding ops (e.g. replay-buffer gathers).
    matmul_elems = N_IN * H_PAD + 2 * H_PAD * H_PAD + H_PAD * OUT_PAD
    cost = pl.CostEstimate(
        flops=2 * b_pad * matmul_elems,
        transcendentals=0,
        bytes_accessed=(2 * matmul_elems                # bf16 weights
                        + 4 * (3 * H_PAD + OUT_PAD)      # f32 biases
                        + b_pad * N_IN * 4               # f32 input
                        + b_pad * OUT_PAD * 2))          # bf16 output

    out = pl.pallas_call(
        _policy_mlp_kernel,
        out_shape=jax.ShapeDtypeStruct((b_pad, OUT_PAD), jnp.bfloat16),
        grid=(n_tiles,),
        in_specs=[
            pl.BlockSpec((tm, N_IN), lambda i: (i, 0)),     # x tile
            pl.BlockSpec((N_IN, H_PAD), resident),          # w1
            pl.BlockSpec((1, H_PAD), resident),             # b1
            pl.BlockSpec((H_PAD, H_PAD), resident),         # w2
            pl.BlockSpec((1, H_PAD), resident),             # b2
            pl.BlockSpec((H_PAD, H_PAD), resident),         # w3
            pl.BlockSpec((1, H_PAD), resident),             # b3
            pl.BlockSpec((H_PAD, OUT_PAD), resident),       # w4
            pl.BlockSpec((1, OUT_PAD), resident),           # b4
        ],
        out_specs=pl.BlockSpec((tm, OUT_PAD), lambda i: (i, 0)),
        compiler_params=pltpu.CompilerParams(
            dimension_semantics=("parallel",)),  # shards batch tiles across v7x's 2 TCs
        cost_estimate=cost,
    )(x, w1, b1, w2, b2, w3, b3, w4, b4)

    return out[:b, :N_OUT].astype(jnp.float32)


def init_params(key):
    """Mirror policy.weight_init: W ~ Normal(0, sqrt(2/(fan_in+fan_out))),
    biases ~ U(-1/sqrt(fan_in), 1/sqrt(fan_in)) (PyTorch Linear default).
    Weights stored as (in_features, out_features), f32 logical shapes."""
    dims = [(N_IN, N_HID), (N_HID, N_HID), (N_HID, N_HID), (N_HID, N_OUT)]
    params = []
    keys = jax.random.split(key, 2 * len(dims))
    for idx, (fan_in, fan_out) in enumerate(dims):
        kw, kb = keys[2 * idx], keys[2 * idx + 1]
        std = jnp.sqrt(2.0 / (fan_in + fan_out)).astype(jnp.float32)
        w = std * jax.random.normal(kw, (fan_in, fan_out), dtype=jnp.float32)
        bound = 1.0 / jnp.sqrt(jnp.float32(fan_in))
        bias = jax.random.uniform(kb, (1, fan_out), jnp.float32, -bound, bound)
        params.append((w, bias))
    return tuple(params)


def prepare_params(params):
    """Pad hidden/output dims to 128-multiples and cast weights to bf16.
    Zero padding keeps the forward math identical; bf16 is the only precision change."""
    # TODO(synk): optional int8 weight quantization (per-channel scales) would halve
    # the per-call weight DMA on v5e/v6e; not done here (v7x MXU has no int path).
    (w1, b1), (w2, b2), (w3, b3), (w4, b4) = params

    def pad2(a, rows, cols):
        return jnp.pad(a, ((0, rows - a.shape[0]), (0, cols - a.shape[1])))

    return (
        pad2(w1, N_IN, H_PAD).astype(jnp.bfloat16), pad2(b1, 1, H_PAD),
        pad2(w2, H_PAD, H_PAD).astype(jnp.bfloat16), pad2(b2, 1, H_PAD),
        pad2(w3, H_PAD, H_PAD).astype(jnp.bfloat16), pad2(b3, 1, H_PAD),
        pad2(w4, H_PAD, OUT_PAD).astype(jnp.bfloat16), pad2(b4, 1, OUT_PAD),
    )


def get_action(state, prepared):
    """Equivalent of policy.get_action: argmax over Q-values of a single state.

    Uses the small-batch (TM=8) kernel path; the (8,128) bf16 output slab is
    ~2 KiB, so host-side argmax over the (1,4) slice is negligible.
    """
    q = policy_forward(state.reshape(1, N_IN).astype(jnp.float32), prepared)
    return jnp.argmax(q, axis=1)[0]


def reference_forward_bf16(x, prepared):
    """Bit-mirrors the kernel's precision (bf16 weights/activations, f32 accum,
    bf16 output store)."""
    w1, b1, w2, b2, w3, b3, w4, b4 = prepared

    def lin(h, w, bias):
        hb = h.astype(jnp.bfloat16)
        return jnp.dot(hb, w, preferred_element_type=jnp.float32) + bias

    h = jnp.maximum(lin(x, w1, b1), 0.0)
    h = jnp.maximum(lin(h, w2, b2), 0.0)
    h = jnp.maximum(lin(h, w3, b3), 0.0)
    out = lin(h, w4, b4)[:, :N_OUT]
    return out.astype(jnp.bfloat16).astype(jnp.float32)


def reference_forward_f32(x, params):
    """Pure f32 reference with the original (unpadded) weights."""
    (w1, b1), (w2, b2), (w3, b3), (w4, b4) = params
    h = jnp.maximum(x @ w1 + b1, 0.0)
    h = jnp.maximum(h @ w2 + b2, 0.0)
    h = jnp.maximum(h @ w3 + b3, 0.0)
    return h @ w4 + b4


# TODO(synk): training pieces (Adam optimizer, weighted_loss/Huber, weight copy/save)
# are host-side PyTorch utilities and are intentionally not ported to Pallas.

if __name__ == "__main__":
    key = jax.random.PRNGKey(0)
    k_params, k_x, k_xb = jax.random.split(key, 3)

    params = init_params(k_params)
    prepared = prepare_params(params)

    # Latency path: batch=2 states of dim 8 (exercises the TM=8 small-batch tile).
    x = jax.random.normal(k_x, (2, N_IN), dtype=jnp.float32)
    q = jax.block_until_ready(policy_forward(x, prepared))
    assert q.shape == (2, N_OUT)
    assert jnp.allclose(q, reference_forward_bf16(x, prepared), atol=1e-2, rtol=1e-2)
    assert jnp.allclose(q, reference_forward_f32(x, params), atol=1e-1, rtol=1e-1)

    # Training-sized path: B=300 -> TM=256, 2 grid tiles (exercises batch padding,
    # multi-tile pipelining, and the parallel batch axis).
    xb = jax.random.normal(k_xb, (300, N_IN), dtype=jnp.float32)
    qb = jax.block_until_ready(policy_forward(xb, prepared))
    assert qb.shape == (300, N_OUT)
    assert jnp.allclose(qb, reference_forward_bf16(xb, prepared), atol=1e-2, rtol=1e-2)
    assert jnp.allclose(qb, reference_forward_f32(xb, params), atol=1e-1, rtol=1e-1)

    # Exercise the get_action path once (B=1, small-tile latency path).
    a = jax.block_until_ready(get_action(x[0], prepared))
    assert 0 <= int(a) < N_OUT

    print("KERNEL_OK")
</pallas_src>

<mosaic_0001>
module attributes {stable_mosaic.version = 11 : i64} {
  func.func @_policy_mlp_kernel(%arg0: i32, %arg1: memref<8x8xf32, #tpu.memory_space<vmem>>, %arg2: memref<8x384xbf16, #tpu.memory_space<vmem>>, %arg3: memref<1x384xf32, #tpu.memory_space<vmem>>, %arg4: memref<384x384xbf16, #tpu.memory_space<vmem>>, %arg5: memref<1x384xf32, #tpu.memory_space<vmem>>, %arg6: memref<384x384xbf16, #tpu.memory_space<vmem>>, %arg7: memref<1x384xf32, #tpu.memory_space<vmem>>, %arg8: memref<384x128xbf16, #tpu.memory_space<vmem>>, %arg9: memref<1x128xf32, #tpu.memory_space<vmem>>, %arg10: memref<8x128xbf16, #tpu.memory_space<vmem>>) attributes {dimension_semantics = [#tpu.dimension_semantics<parallel>], iteration_bounds = array<i64: 1>, scalar_prefetch = 0 : i64, scratch_operands = 0 : i64, tpu.core_type = #tpu.core_type<tc>, window_params = [{transform_indices = @transform_0, window_bounds = array<i64: 8, 8>}, {pipeline_mode = #tpu.pipeline_mode<synchronous>, transform_indices = @transform_1, window_bounds = array<i64: 8, 384>}, {pipeline_mode = #tpu.pipeline_mode<synchronous>, transform_indices = @transform_2, window_bounds = array<i64: 1, 384>}, {pipeline_mode = #tpu.pipeline_mode<synchronous>, transform_indices = @transform_3, window_bounds = array<i64: 384, 384>}, {pipeline_mode = #tpu.pipeline_mode<synchronous>, transform_indices = @transform_4, window_bounds = array<i64: 1, 384>}, {pipeline_mode = #tpu.pipeline_mode<synchronous>, transform_indices = @transform_5, window_bounds = array<i64: 384, 384>}, {pipeline_mode = #tpu.pipeline_mode<synchronous>, transform_indices = @transform_6, window_bounds = array<i64: 1, 384>}, {pipeline_mode = #tpu.pipeline_mode<synchronous>, transform_indices = @transform_7, window_bounds = array<i64: 384, 128>}, {pipeline_mode = #tpu.pipeline_mode<synchronous>, transform_indices = @transform_8, window_bounds = array<i64: 1, 128>}, {transform_indices = @transform_9, window_bounds = array<i64: 8, 128>}]} {
    %c0 = arith.constant 0 : index
    %c0_0 = arith.constant 0 : index
    %0 = vector.load %arg1[%c0, %c0_0] : memref<8x8xf32, #tpu.memory_space<vmem>>, vector<8x8xf32>
    %1 = arith.truncf %0 : vector<8x8xf32> to vector<8x8xbf16>
    %c0_1 = arith.constant 0 : index
    %c0_2 = arith.constant 0 : index
    %2 = vector.load %arg2[%c0_1, %c0_2] : memref<8x384xbf16, #tpu.memory_space<vmem>>, vector<8x384xbf16>
    %cst = arith.constant dense<0.000000e+00> : vector<8x384xf32>
    %3 = tpu.matmul %1, %2, %cst {dimension_numbers = #tpu.dot_dimension_numbers<[1], [0], [0], [1], [0, 0, 1, 1], [], []>} : vector<8x8xbf16>, vector<8x384xbf16>, vector<8x384xf32> -> vector<8x384xf32>
    %c0_3 = arith.constant 0 : index
    %c0_4 = arith.constant 0 : index
    %4 = vector.load %arg3[%c0_3, %c0_4] : memref<1x384xf32, #tpu.memory_space<vmem>>, vector<1x384xf32>
    %5 = vector.broadcast %4 : vector<1x384xf32> to vector<8x384xf32>
    %6 = arith.addf %3, %5 : vector<8x384xf32>
    %cst_5 = arith.constant 0.000000e+00 : f32
    %7 = vector.broadcast %cst_5 : f32 to vector<8x384xf32>
    %8 = arith.maximumf %6, %7 : vector<8x384xf32>
    %9 = arith.truncf %8 : vector<8x384xf32> to vector<8x384xbf16>
    %c0_6 = arith.constant 0 : index
    %c0_7 = arith.constant 0 : index
    %10 = vector.load %arg4[%c0_6, %c0_7] : memref<384x384xbf16, #tpu.memory_space<vmem>>, vector<384x384xbf16>
    %cst_8 = arith.constant dense<0.000000e+00> : vector<8x384xf32>
    %11 = tpu.matmul %9, %10, %cst_8 {dimension_numbers = #tpu.dot_dimension_numbers<[1], [0], [0], [1], [0, 0, 1, 1], [], []>} : vector<8x384xbf16>, vector<384x384xbf16>, vector<8x384xf32> -> vector<8x384xf32>
    %c0_9 = arith.constant 0 : index
    %c0_10 = arith.constant 0 : index
    %12 = vector.load %arg5[%c0_9, %c0_10] : memref<1x384xf32, #tpu.memory_space<vmem>>, vector<1x384xf32>
    %13 = vector.broadcast %12 : vector<1x384xf32> to vector<8x384xf32>
    %14 = arith.addf %11, %13 : vector<8x384xf32>
    %cst_11 = arith.constant 0.000000e+00 : f32
    %15 = vector.broadcast %cst_11 : f32 to vector<8x384xf32>
    %16 = arith.maximumf %14, %15 : vector<8x384xf32>
    %17 = arith.truncf %16 : vector<8x384xf32> to vector<8x384xbf16>
    %c0_12 = arith.constant 0 : index
    %c0_13 = arith.constant 0 : index
    %18 = vector.load %arg6[%c0_12, %c0_13] : memref<384x384xbf16, #tpu.memory_space<vmem>>, vector<384x384xbf16>
    %cst_14 = arith.constant dense<0.000000e+00> : vector<8x384xf32>
    %19 = tpu.matmul %17, %18, %cst_14 {dimension_numbers = #tpu.dot_dimension_numbers<[1], [0], [0], [1], [0, 0, 1, 1], [], []>} : vector<8x384xbf16>, vector<384x384xbf16>, vector<8x384xf32> -> vector<8x384xf32>
    %c0_15 = arith.constant 0 : index
    %c0_16 = arith.constant 0 : index
    %20 = vector.load %arg7[%c0_15, %c0_16] : memref<1x384xf32, #tpu.memory_space<vmem>>, vector<1x384xf32>
    %21 = vector.broadcast %20 : vector<1x384xf32> to vector<8x384xf32>
    %22 = arith.addf %19, %21 : vector<8x384xf32>
    %cst_17 = arith.constant 0.000000e+00 : f32
    %23 = vector.broadcast %cst_17 : f32 to vector<8x384xf32>
    %24 = arith.maximumf %22, %23 : vector<8x384xf32>
    %25 = arith.truncf %24 : vector<8x384xf32> to vector<8x384xbf16>
    %c0_18 = arith.constant 0 : index
    %c0_19 = arith.constant 0 : index
    %26 = vector.load %arg8[%c0_18, %c0_19] : memref<384x128xbf16, #tpu.memory_space<vmem>>, vector<384x128xbf16>
    %cst_20 = arith.constant dense<0.000000e+00> : vector<8x128xf32>
    %27 = tpu.matmul %25, %26, %cst_20 {dimension_numbers = #tpu.dot_dimension_numbers<[1], [0], [0], [1], [0, 0, 1, 1], [], []>} : vector<8x384xbf16>, vector<384x128xbf16>, vector<8x128xf32> -> vector<8x128xf32>
    %c0_21 = arith.constant 0 : index
    %c0_22 = arith.constant 0 : index
    %28 = vector.load %arg9[%c0_21, %c0_22] : memref<1x128xf32, #tpu.memory_space<vmem>>, vector<1x128xf32>
    %29 = vector.broadcast %28 : vector<1x128xf32> to vector<8x128xf32>
    %30 = arith.addf %27, %29 : vector<8x128xf32>
    %31 = arith.truncf %30 : vector<8x128xf32> to vector<8x128xbf16>
    %c0_23 = arith.constant 0 : index
    %c0_24 = arith.constant 0 : index
    %32 = vector.load %arg10[%c0_23, %c0_24] : memref<8x128xbf16, #tpu.memory_space<vmem>>, vector<8x128xbf16>
    tpu.vector_store %arg10[%c0_23, %c0_24], %31 {strides = array<i32>} : memref<8x128xbf16, #tpu.memory_space<vmem>>, vector<8x128xbf16>,
    return
  }
  func.func @transform_0(%arg0: i32) -> (i32, i32) {
    %c0_i32 = arith.constant 0 : i32
    %c0_i32_0 = arith.constant 0 : i32
    return %arg0, %c0_i32 : i32, i32
  }
  func.func @transform_1(%arg0: i32) -> (i32, i32) {
    %c0_i32 = arith.constant 0 : i32
    %c0_i32_0 = arith.constant 0 : i32
    %c0_i32_1 = arith.constant 0 : i32
    return %c0_i32, %c0_i32_0 : i32, i32
  }
  func.func @transform_2(%arg0: i32) -> (i32, i32) {
    %c0_i32 = arith.constant 0 : i32
    %c0_i32_0 = arith.constant 0 : i32
    %c0_i32_1 = arith.constant 0 : i32
    return %c0_i32, %c0_i32_0 : i32, i32
  }
  func.func @transform_3(%arg0: i32) -> (i32, i32) {
    %c0_i32 = arith.constant 0 : i32
    %c0_i32_0 = arith.constant 0 : i32
    %c0_i32_1 = arith.constant 0 : i32
    return %c0_i32, %c0_i32_0 : i32, i32
  }
  func.func @transform_4(%arg0: i32) -> (i32, i32) {
    %c0_i32 = arith.constant 0 : i32
    %c0_i32_0 = arith.constant 0 : i32
    %c0_i32_1 = arith.constant 0 : i32
    return %c0_i32, %c0_i32_0 : i32, i32
  }
  func.func @transform_5(%arg0: i32) -> (i32, i32) {
    %c0_i32 = arith.constant 0 : i32
    %c0_i32_0 = arith.constant 0 : i32
    %c0_i32_1 = arith.constant 0 : i32
    return %c0_i32, %c0_i32_0 : i32, i32
  }
  func.func @transform_6(%arg0: i32) -> (i32, i32) {
    %c0_i32 = arith.constant 0 : i32
    %c0_i32_0 = arith.constant 0 : i32
    %c0_i32_1 = arith.constant 0 : i32
    return %c0_i32, %c0_i32_0 : i32, i32
  }
  func.func @transform_7(%arg0: i32) -> (i32, i32) {
    %c0_i32 = arith.constant 0 : i32
    %c0_i32_0 = arith.constant 0 : i32
    %c0_i32_1 = arith.constant 0 : i32
    return %c0_i32, %c0_i32_0 : i32, i32
  }
  func.func @transform_8(%arg0: i32) -> (i32, i32) {
    %c0_i32 = arith.constant 0 : i32
    %c0_i32_0 = arith.constant 0 : i32
    %c0_i32_1 = arith.constant 0 : i32
    return %c0_i32, %c0_i32_0 : i32, i32
  }
  func.func @transform_9(%arg0: i32) -> (i32, i32) {
    %c0_i32 = arith.constant 0 : i32
    %c0_i32_0 = arith.constant 0 : i32
    return %arg0, %c0_i32 : i32, i32
  }
}

</mosaic_0001>

<llo_original>
// kernel: policy_forward.1
$region0: #{policy_forward.1}
  #allocation0 [shape = 'u32[]', space=smem, size = 0x4, offset = 0x4, fixed_abs, tag = 'smem constant byte address 0x4 - core index']
  #allocation1 [shape = 'u32[144,128]{1,0:T(1,128)}', space=vmem, size = 0x12000, scoped, tag = 'internal scratch']
  %s0 = inlined_call_operand.vmem [shape: f32[8,8], index: 0, kind: input, shape index: {}]
  %s1 = inlined_call_operand.vmem [shape: bf16[8,384], index: 1, kind: input, shape index: {}]
  %s2 = inlined_call_operand.hbm [shape: f32[1,384], index: 2, kind: input, shape index: {}]
  %s3 = inlined_call_operand.hbm [shape: bf16[384,384], index: 3, kind: input, shape index: {}]
  %s4 = inlined_call_operand.vmem [shape: f32[1,384], index: 4, kind: input, shape index: {}]
  %s5 = inlined_call_operand.hbm [shape: bf16[384,384], index: 5, kind: input, shape index: {}]
  %s6 = inlined_call_operand.vmem [shape: f32[1,384], index: 6, kind: input, shape index: {}]
  %s7 = inlined_call_operand.hbm [shape: bf16[384,128], index: 7, kind: input, shape index: {}]
  %s8 = inlined_call_operand.vmem [shape: f32[1,128], index: 8, kind: input, shape index: {}]
  %s9 = inlined_call_operand.vmem [shape: bf16[8,128], index: 9, kind: output, shape index: {}]
  %s10 = sld [smem:[#allocation0]]
  $region62: #{policy_forward.1} parent=0
    _
  %s12 = ssub.s32 1, %s10
  %s13 = scalar_select 0, %s12, %s10
  $region1: #{policy_forward.1} parent=0
    #allocation2 [shape = 'u8[1536]{0}', space=vmem, size = 0x800, scoped, tag = 'input window, operand 2, single buffered']
    #allocation3 [shape = 's32[1]{0}', space=sflag, size = 0x4, scoped, tag = 'scoped memory for policy_forward.1']
    #allocation4 [shape = 'u8[294912]{0}', space=vmem, size = 0x48000, scoped, tag = 'input window, operand 3, single buffered']
    #allocation5 [shape = 's32[1]{0}', space=sflag, size = 0x4, scoped, tag = 'scoped memory for policy_forward.1']
    #allocation6 [shape = 'u8[294912]{0}', space=vmem, size = 0x48000, scoped, tag = 'input window, operand 5, single buffered']
    #allocation7 [shape = 'u8[98304]{0}', space=vmem, size = 0x18000, scoped, tag = 'input window, operand 7, single buffered']
    #allocation8 [shape = 's32[1]{0}', space=sflag, size = 0x4, scoped, tag = 'scoped memory for policy_forward.1']
    %14 = vsyncpa [#allocation3], 0
    %15 = vsyncpa [#allocation5], 0
    %16 = vsyncpa [#allocation8], 0
    // Predicated region
    $region2: #{policy_forward.1} parent=1 // pred_check
      _
    $region3: #{policy_forward.1} parent=1 // pred_check_branch
      %18 = sbr.rel (0) target = $region5
    $region4: #{policy_forward.1} parent=1 // pred_region
      _
    $region5: #{policy_forward.1} parent=1 // pred_fallthru
      _
    // Predicated region
    $region6: #{policy_forward.1} parent=1 // pred_check
      _
    $region7: #{policy_forward.1} parent=1 // pred_check_branch
      %20 = sbr.rel (0) target = $region9
    $region8: #{policy_forward.1} parent=1 // pred_region
      _
    $region9: #{policy_forward.1} parent=1 // pred_fallthru
      _
    // Predicated region
    $region10: #{policy_forward.1} parent=1 // pred_check
      _
    $region11: #{policy_forward.1} parent=1 // pred_check_branch
      %22 = sbr.rel (0) target = $region13
    $region12: #{policy_forward.1} parent=1 // pred_region
      %s24 = ssub.s32 48, 48
      %25 = vsyncadd [#allocation3], %s24
      %s27 = sshll.u32 [#allocation2], 4
      %s28 = int_to_ptr.vmem [resolvable:$true] %s27
      %30 = dma.hbm_to_vmem [thread:$0]  %s2, 48, %s28, [#allocation3]
    $region13: #{policy_forward.1} parent=1 // pred_fallthru
      _
    // Predicated region
    $region14: #{policy_forward.1} parent=1 // pred_check
      _
    $region15: #{policy_forward.1} parent=1 // pred_check_branch
      %32 = sbr.rel (0) target = $region17
    $region16: #{policy_forward.1} parent=1 // pred_region
      %s34 = ssub.s32 9216, 9216
      %35 = vsyncadd [#allocation5], %s34
      %s36 = sshll.u32 [#allocation4], 4
      %s37 = int_to_ptr.vmem [resolvable:$true] %s36
      %42 = dma.hbm_to_vmem [thread:$0]  %s3, 9216, %s37, [#allocation5], 192, 192, 12
    $region17: #{policy_forward.1} parent=1 // pred_fallthru
      _
    // Predicated region
    $region18: #{policy_forward.1} parent=1 // pred_check
      _
    $region19: #{policy_forward.1} parent=1 // pred_check_branch
      %44 = sbr.rel (0) target = $region21
    $region20: #{policy_forward.1} parent=1 // pred_region
      _
    $region21: #{policy_forward.1} parent=1 // pred_fallthru
      _
    // Predicated region
    $region22: #{policy_forward.1} parent=1 // pred_check
      _
    $region23: #{policy_forward.1} parent=1 // pred_check_branch
      %46 = sbr.rel (0) target = $region25
    $region24: #{policy_forward.1} parent=1 // pred_region
      %s48 = ssub.s32 9216, 9216
      %49 = vsyncadd [#allocation5], %s48
      %s50 = sshll.u32 [#allocation6], 4
      %s51 = int_to_ptr.vmem [resolvable:$true] %s50
      %56 = dma.hbm_to_vmem [thread:$0]  %s5, 9216, %s51, [#allocation5], 192, 192, 12
    $region25: #{policy_forward.1} parent=1 // pred_fallthru
      _
    // Predicated region
    $region26: #{policy_forward.1} parent=1 // pred_check
      _
    $region27: #{policy_forward.1} parent=1 // pred_check_branch
      %58 = sbr.rel (0) target = $region29
    $region28: #{policy_forward.1} parent=1 // pred_region
      _
    $region29: #{policy_forward.1} parent=1 // pred_fallthru
      _
    // Predicated region
    $region30: #{policy_forward.1} parent=1 // pred_check
      _
    $region31: #{policy_forward.1} parent=1 // pred_check_branch
      %60 = sbr.rel (0) target = $region33
    $region32: #{policy_forward.1} parent=1 // pred_region
      %s62 = ssub.s32 3072, 3072
      %63 = vsyncadd [#allocation8], %s62
      %s64 = sshll.u32 [#allocation7], 4
      %s65 = int_to_ptr.vmem [resolvable:$true] %s64
      %70 = dma.hbm_to_vmem [thread:$0]  %s7, 3072, %s65, [#allocation8], 64, 64, 4
    $region33: #{policy_forward.1} parent=1 // pred_fallthru
      _
    // Predicated region
    $region34: #{policy_forward.1} parent=1 // pred_check
      _
    $region35: #{policy_forward.1} parent=1 // pred_check_branch
      %72 = sbr.rel (0) target = $region37
    $region36: #{policy_forward.1} parent=1 // pred_region
      _
    $region37: #{policy_forward.1} parent=1 // pred_fallthru
      _
    // Predicated region
    $region38: #{policy_forward.1} parent=1 // pred_check
      _
    $region39: #{policy_forward.1} parent=1 // pred_check_branch
      %74 = sbr.rel (0) target = $region41
    $region40: #{policy_forward.1} parent=1 // pred_region
      %75 = dma.done [#allocation3], 48
    $region41: #{policy_forward.1} parent=1 // pred_fallthru
      _
    // Predicated region
    $region42: #{policy_forward.1} parent=1 // pred_check
      _
    $region43: #{policy_forward.1} parent=1 // pred_check_branch
      %77 = sbr.rel (0) target = $region45
    $region44: #{policy_forward.1} parent=1 // pred_region
      %78 = dma.done [#allocation5], 9216
    $region45: #{policy_forward.1} parent=1 // pred_fallthru
      _
    // Predicated region
    $region46: #{policy_forward.1} parent=1 // pred_check
      _
    $region47: #{policy_forward.1} parent=1 // pred_check_branch
      %80 = sbr.rel (0) target = $region49
    $region48: #{policy_forward.1} parent=1 // pred_region
      %81 = dma.done [#allocation5], 9216
    $region49: #{policy_forward.1} parent=1 // pred_fallthru
      _
    // Predicated region
    $region50: #{policy_forward.1} parent=1 // pred_check
      _
    $region51: #{policy_forward.1} parent=1 // pred_check_branch
      %83 = sbr.rel (0) target = $region53
    $region52: #{policy_forward.1} parent=1 // pred_region
      %84 = dma.done [#allocation8], 3072
    $region53: #{policy_forward.1} parent=1 // pred_fallthru
      _
    %v86 = vld [vmem:[%s0] sm:$0xff]
    %v87 = vpack.c.bf16 %v86, %v86
    %v88 = vld [vmem:[%s1] sm:$0xff]
    %v89 = vld [vmem:[%s1 + $0x8] sm:$0xf]
    %v90 = vld [vmem:[#allocation2] sm:$0x7]
    %v92 = vlaneseq
    %v93 = vshrl.u32 %v92, 7
    %v94 = vsub.s32 0, %v93
    %v95 = vrot.slane %v90, %v94
    %v96 = vlaneseq
    %v97 = vshrl.u32 %v96, 7
    %v98 = vsub.s32 1, %v97
    %v99 = vrot.slane %v90, %v98
    %v100 = vlaneseq
    %v101 = vshrl.u32 %v100, 7
    %v102 = vsub.s32 2, %v101
    %v103 = vrot.slane %v90, %v102
    %v109 = vunpack.c.l.b16 %v88
    %v110 = vunpack.c.h.b16 %v88
    %v111 = vunpack.c.l.b16 %v89
    %v112 = vpack.c.b16 %v109, %v109
    %v113 = vpack.c.b16 %v110, %v110
    %v114 = vpack.c.b16 %v111, %v111
    %vm115 = vcmask 64512
    %v117 = vsel %vm115, %v87, 0
    %vm119 = vcmask 1043456
    %v121 = vsel %vm119, %v112, 0
    %v124 = vsel %vm119, %v113, 0
    %v127 = vsel %vm119, %v114, 0
    %129 = vmatprep.subr.bf16.mxu0 0
    %130 = vmatpush1.bf16.msra.mxu0 0
    %131 = vmatprep.subr.bf16.mxu0 0
    %132 = vmatpush1.bf16.msra.mxu0 0
    %133 = vmatprep.subr.bf16.mxu0 0
    %134 = vmatpush1.bf16.msra.mxu0 0
    %135 = vmatprep.subr.bf16.mxu0 0
    %136 = vmatpush1.bf16.msra.mxu0 0
    %137 = vmatprep.subr.bf16.mxu0 0
    %138 = vmatpush1.bf16.msra.mxu0 0
    %139 = vmatprep.subr.bf16.mxu0 0
    %140 = vmatpush1.bf16.msra.mxu0 0
    %141 = vmatprep.subr.bf16.mxu0 0
    %142 = vmatpush1.bf16.msra.mxu0 0
    %143 = vmatprep.subr.bf16.mxu0 %v124
    %144 = vmatpush1.bf16.msra.mxu0 %v121
    %145 = vmatprep.subr.bf16.mxu0 0
    %146 = vmatpush2.bf16.msra.mxu0 0
    %147 = vmatprep.subr.bf16.mxu0 0
    %148 = vmatpush2.bf16.msra.mxu0 0
    %149 = vmatprep.subr.bf16.mxu0 0
    %150 = vmatpush2.bf16.msra.mxu0 0
    %151 = vmatprep.subr.bf16.mxu0 0
    %152 = vmatpush2.bf16.msra.mxu0 0
    %153 = vmatprep.subr.bf16.mxu0 0
    %154 = vmatpush2.bf16.msra.mxu0 0
    %155 = vmatprep.subr.bf16.mxu0 0
    %156 = vmatpush2.bf16.msra.mxu0 0
    %157 = vmatprep.subr.bf16.mxu0 0
    %158 = vmatpush2.bf16.msra.mxu0 0
    %159 = vmatprep.subr.bf16.mxu0 0
    %160 = vmatpush2.bf16.msra.mxu0 0
    %161 = vmatprep.mubr.bf16.mxu0 0
    %162 = vmatmul.mubr.bf16.gmra.mxu0 %v117
    %v163 = vpop.f32.mrf.mxu0
    %v164 = vadd.f32 %v95, %v163
    %v165 = vpop.f32.mrf.mxu0
    %v166 = vadd.f32 %v99, %v165
    %v167 = vpop.f32.mrf.mxu0
    %v168 = vpop.f32.mrf.mxu0
    %169 = vdwg.mxu0
    %170 = vmatprep.subr.bf16.mxu0 0
    %171 = vmatpush1.bf16.msra.mxu0 0
    %172 = vmatprep.subr.bf16.mxu0 0
    %173 = vmatpush1.bf16.msra.mxu0 0
    %174 = vmatprep.subr.bf16.mxu0 0
    %175 = vmatpush1.bf16.msra.mxu0 0
    %176 = vmatprep.subr.bf16.mxu0 0
    %177 = vmatpush1.bf16.msra.mxu0 0
    %178 = vmatprep.subr.bf16.mxu0 0
    %179 = vmatpush1.bf16.msra.mxu0 0
    %180 = vmatprep.subr.bf16.mxu0 0
    %181 = vmatpush1.bf16.msra.mxu0 0
    %182 = vmatprep.subr.bf16.mxu0 0
    %183 = vmatpush1.bf16.msra.mxu0 0
    %184 = vmatprep.subr.bf16.mxu0 0
    %185 = vmatpush1.bf16.msra.mxu0 %v127
    %186 = vmatprep.subr.bf16.mxu0 0
    %187 = vmatpush2.bf16.msra.mxu0 0
    %188 = vmatprep.subr.bf16.mxu0 0
    %189 = vmatpush2.bf16.msra.mxu0 0
    %190 = vmatprep.subr.bf16.mxu0 0
    %191 = vmatpush2.bf16.msra.mxu0 0
    %192 = vmatprep.subr.bf16.mxu0 0
    %193 = vmatpush2.bf16.msra.mxu0 0
    %194 = vmatprep.subr.bf16.mxu0 0
    %195 = vmatpush2.bf16.msra.mxu0 0
    %196 = vmatprep.subr.bf16.mxu0 0
    %197 = vmatpush2.bf16.msra.mxu0 0
    %198 = vmatprep.subr.bf16.mxu0 0
    %199 = vmatpush2.bf16.msra.mxu0 0
    %200 = vmatprep.subr.bf16.mxu0 0
    %201 = vmatpush2.bf16.msra.mxu0 0
    %202 = vmatprep.mubr.bf16.mxu0 0
    %203 = vmatmul.mubr.bf16.gmra.mxu0 %v117
    %v204 = vpop.f32.mrf.mxu0
    %v205 = vadd.f32 %v103, %v204
    %v206 = vpop.f32.mrf.mxu0
    %v207 = vpop.f32.mrf.mxu0
    %v208 = vpop.f32.mrf.mxu0
    %209 = vdwg.mxu0
    %v210 = vmax.f32 %v164, 0.0
    %v211 = vmax.f32 %v166, 0.0
    %v212 = vmax.f32 %v205, 0.0
    %v213 = vpack.c.bf16 %v210, %v210
    %v214 = vpack.c.bf16 %v211, %v211
    %v215 = vpack.c.bf16 %v212, %v212
    %v216 = vld [vmem:[#allocation4] sm:$0xff]
    %v217 = vld [vmem:[#allocation4 + $0x8] sm:$0xf]
    %v218 = vld [vmem:[#allocation4 + $0xc] sm:$0xff]
    %v219 = vld [vmem:[#allocation4 + $0x14] sm:$0xf]
    %v220 = vld [vmem:[#allocation4 + $0x18] sm:$0xff]
    %v221 = vld [vmem:[#allocation4 + $0x20] sm:$0xf]
    %v222 = vld [vmem:[#allocation4 + $0x24] sm:$0xff]
    %v223 = vld [vmem:[#allocation4 + $0x2c] sm:$0xf]
    %v224 = vld [vmem:[#allocation4 + $0x30] sm:$0xff]
    %v225 = vld [vmem:[#allocation4 + $0x38] sm:$0xf]
    %v226 = vld [vmem:[#allocation4 + $0x3c] sm:$0xff]
    %v227 = vld [vmem:[#allocation4 + $0x44] sm:$0xf]
    %v228 = vld [vmem:[#allocation4 + $0x48] sm:$0xff]
    %v229 = vld [vmem:[#allocation4 + $0x50] sm:$0xf]
    %v230 = vld [vmem:[#allocation4 + $0x54] sm:$0xff]
    %v231 = vld [vmem:[#allocation4 + $0x5c] sm:$0xf]
    %v232 = vld [vmem:[#allocation4 + $0x60] sm:$0xff]
    %v233 = vld [vmem:[#allocation4 + $0x68] sm:$0xf]
    %v234 = vld [vmem:[#allocation4 + $0x6c] sm:$0xff]
    %v235 = vld [vmem:[#allocation4 + $0x74] sm:$0xf]
    %v236 = vld [vmem:[#allocation4 + $0x78] sm:$0xff]
    %v237 = vld [vmem:[#allocation4 + $0x80] sm:$0xf]
    %v238 = vld [vmem:[#allocation4 + $0x84] sm:$0xff]
    %v239 = vld [vmem:[#allocation4 + $0x8c] sm:$0xf]
    %v240 = vld [vmem:[#allocation4 + $0x90] sm:$0xff]
    %v241 = vld [vmem:[#allocation4 + $0x98] sm:$0xf]
    %v242 = vld [vmem:[#allocation4 + $0x9c] sm:$0xff]
    %v243 = vld [vmem:[#allocation4 + $0xa4] sm:$0xf]
    %v244 = vld [vmem:[#allocation4 + $0xa8] sm:$0xff]
    %v245 = vld [vmem:[#allocation4 + $0xb0] sm:$0xf]
    %v246 = vld [vmem:[#allocation4 + $0xb4] sm:$0xff]
    %v247 = vld [vmem:[#allocation4 + $0xbc] sm:$0xf]
    %v248 = vld [vmem:[#allocation4 + $0xc0] sm:$0xff]
    %v249 = vld [vmem:[#allocation4 + $0xc8] sm:$0xf]
    %v250 = vld [vmem:[#allocation4 + $0xcc] sm:$0xff]
    %v251 = vld [vmem:[#allocation4 + $0xd4] sm:$0xf]
    %v252 = vld [vmem:[#allocation4 + $0xd8] sm:$0xff]
    %v253 = vld [vmem:[#allocation4 + $0xe0] sm:$0xf]
    %v254 = vld [vmem:[#allocation4 + $0xe4] sm:$0xff]
    %v255 = vld [vmem:[#allocation4 + $0xec] sm:$0xf]
    %v256 = vld [vmem:[#allocation4 + $0xf0] sm:$0xff]
    %v257 = vld [vmem:[#allocation4 + $0xf8] sm:$0xf]
    %v258 = vld [vmem:[#allocation4 + $0xfc] sm:$0xff]
    %v259 = vld [vmem:[#allocation4 + $0x104] sm:$0xf]
    %v260 = vld [vmem:[#allocation4 + $0x108] sm:$0xff]
    %v261 = vld [vmem:[#allocation4 + $0x110] sm:$0xf]
    %v262 = vld [vmem:[#allocation4 + $0x114] sm:$0xff]
    %v263 = vld [vmem:[#allocation4 + $0x11c] sm:$0xf]
    %v264 = vld [vmem:[#allocation4 + $0x120] sm:$0xff]
    %v265 = vld [vmem:[#allocation4 + $0x128] sm:$0xf]
    %v266 = vld [vmem:[#allocation4 + $0x12c] sm:$0xff]
    %v267 = vld [vmem:[#allocation4 + $0x134] sm:$0xf]
    %v268 = vld [vmem:[#allocation4 + $0x138] sm:$0xff]
    %v269 = vld [vmem:[#allocation4 + $0x140] sm:$0xf]
    %v270 = vld [vmem:[#allocation4 + $0x144] sm:$0xff]
    %v271 = vld [vmem:[#allocation4 + $0x14c] sm:$0xf]
    %v272 = vld [vmem:[#allocation4 + $0x150] sm:$0xff]
    %v273 = vld [vmem:[#allocation4 + $0x158] sm:$0xf]
    %v274 = vld [vmem:[#allocation4 + $0x15c] sm:$0xff]
    %v275 = vld [vmem:[#allocation4 + $0x164] sm:$0xf]
    %v276 = vld [vmem:[#allocation4 + $0x168] sm:$0xff]
    %v277 = vld [vmem:[#allocation4 + $0x170] sm:$0xf]
    %v278 = vld [vmem:[#allocation4 + $0x174] sm:$0xff]
    %v279 = vld [vmem:[#allocation4 + $0x17c] sm:$0xf]
    %v280 = vld [vmem:[#allocation4 + $0x180] sm:$0xff]
    %v281 = vld [vmem:[#allocation4 + $0x188] sm:$0xf]
    %v282 = vld [vmem:[#allocation4 + $0x18c] sm:$0xff]
    %v283 = vld [vmem:[#allocation4 + $0x194] sm:$0xf]
    %v284 = vld [vmem:[#allocation4 + $0x198] sm:$0xff]
    %v285 = vld [vmem:[#allocation4 + $0x1a0] sm:$0xf]
    %v286 = vld [vmem:[#allocation4 + $0x1a4] sm:$0xff]
    %v287 = vld [vmem:[#allocation4 + $0x1ac] sm:$0xf]
    %v288 = vld [vmem:[#allocation4 + $0x1b0] sm:$0xff]
    %v289 = vld [vmem:[#allocation4 + $0x1b8] sm:$0xf]
    %v290 = vld [vmem:[#allocation4 + $0x1bc] sm:$0xff]
    %v291 = vld [vmem:[#allocation4 + $0x1c4] sm:$0xf]
    %v292 = vld [vmem:[#allocation4 + $0x1c8] sm:$0xff]
    %v293 = vld [vmem:[#allocation4 + $0x1d0] sm:$0xf]
    %v294 = vld [vmem:[#allocation4 + $0x1d4] sm:$0xff]
    %v295 = vld [vmem:[#allocation4 + $0x1dc] sm:$0xf]
    %v296 = vld [vmem:[#allocation4 + $0x1e0] sm:$0xff]
    %v297 = vld [vmem:[#allocation4 + $0x1e8] sm:$0xf]
    %v298 = vld [vmem:[#allocation4 + $0x1ec] sm:$0xff]
    %v299 = vld [vmem:[#allocation4 + $0x1f4] sm:$0xf]
    %v300 = vld [vmem:[#allocation4 + $0x1f8] sm:$0xff]
    %v301 = vld [vmem:[#allocation4 + $0x200] sm:$0xf]
    %v302 = vld [vmem:[#allocation4 + $0x204] sm:$0xff]
    %v303 = vld [vmem:[#allocation4 + $0x20c] sm:$0xf]
    %v304 = vld [vmem:[#allocation4 + $0x210] sm:$0xff]
    %v305 = vld [vmem:[#allocation4 + $0x218] sm:$0xf]
    %v306 = vld [vmem:[#allocation4 + $0x21c] sm:$0xff]
    %v307 = vld [vmem:[#allocation4 + $0x224] sm:$0xf]
    %v308 = vld [vmem:[#allocation4 + $0x228] sm:$0xff]
    %v309 = vld [vmem:[#allocation4 + $0x230] sm:$0xf]
    %v310 = vld [vmem:[#allocation4 + $0x234] sm:$0xff]
    %v311 = vld [vmem:[#allocation4 + $0x23c] sm:$0xf]
    %v312 = vld [vmem:[%s4] sm:$0x7]
    %v314 = vlaneseq
    %v315 = vshrl.u32 %v314, 7
    %v316 = vsub.s32 0, %v315
    %v317 = vrot.slane %v312, %v316
    %v318 = vlaneseq
    %v319 = vshrl.u32 %v318, 7
    %v320 = vsub.s32 1, %v319
    %v321 = vrot.slane %v312, %v320
    %v322 = vlaneseq
    %v323 = vshrl.u32 %v322, 7
    %v324 = vsub.s32 2, %v323
    %v325 = vrot.slane %v312, %v324
    %v425 = vunpack.c.l.b16 %v216
    %v426 = vunpack.c.h.b16 %v216
    %v427 = vunpack.c.l.b16 %v217
    %v428 = vunpack.c.l.b16 %v218
    %v429 = vunpack.c.h.b16 %v218
    %v430 = vunpack.c.l.b16 %v219
    %v431 = vunpack.c.l.b16 %v220
    %v432 = vunpack.c.h.b16 %v220
    %v433 = vunpack.c.l.b16 %v221
    %v434 = vunpack.c.l.b16 %v222
    %v435 = vunpack.c.h.b16 %v222
    %v436 = vunpack.c.l.b16 %v223
    %v437 = vunpack.c.l.b16 %v224
    %v438 = vunpack.c.h.b16 %v224
    %v439 = vunpack.c.l.b16 %v225
    %v440 = vunpack.c.l.b16 %v226
    %v441 = vunpack.c.h.b16 %v226
    %v442 = vunpack.c.l.b16 %v227
    %v443 = vunpack.c.l.b16 %v228
    %v444 = vunpack.c.h.b16 %v228
    %v445 = vunpack.c.l.b16 %v229
    %v446 = vunpack.c.l.b16 %v230
    %v447 = vunpack.c.h.b16 %v230
    %v448 = vunpack.c.l.b16 %v231
    %v449 = vunpack.c.l.b16 %v232
    %v450 = vunpack.c.h.b16 %v232
    %v451 = vunpack.c.l.b16 %v233
    %v452 = vunpack.c.l.b16 %v234
    %v453 = vunpack.c.h.b16 %v234
    %v454 = vunpack.c.l.b16 %v235
    %v455 = vunpack.c.l.b16 %v236
    %v456 = vunpack.c.h.b16 %v236
    %v457 = vunpack.c.l.b16 %v237
    %v458 = vunpack.c.l.b16 %v238
    %v459 = vunpack.c.h.b16 %v238
    %v460 = vunpack.c.l.b16 %v239
    %v461 = vunpack.c.l.b16 %v240
    %v462 = vunpack.c.h.b16 %v240
    %v463 = vunpack.c.l.b16 %v241
    %v464 = vunpack.c.l.b16 %v242
    %v465 = vunpack.c.h.b16 %v242
    %v466 = vunpack.c.l.b16 %v243
    %v467 = vunpack.c.l.b16 %v244
    %v468 = vunpack.c.h.b16 %v244
    %v469 = vunpack.c.l.b16 %v245
    %v470 = vunpack.c.l.b16 %v246
    %v471 = vunpack.c.h.b16 %v246
    %v472 = vunpack.c.l.b16 %v247
    %v473 = vunpack.c.l.b16 %v248
    %v474 = vunpack.c.h.b16 %v248
    %v475 = vunpack.c.l.b16 %v249
    %v476 = vunpack.c.l.b16 %v250
    %v477 = vunpack.c.h.b16 %v250
    %v478 = vunpack.c.l.b16 %v251
    %v479 = vunpack.c.l.b16 %v252
    %v480 = vunpack.c.h.b16 %v252
    %v481 = vunpack.c.l.b16 %v253
    %v482 = vunpack.c.l.b16 %v254
    %v483 = vunpack.c.h.b16 %v254
    %v484 = vunpack.c.l.b16 %v255
    %v485 = vunpack.c.l.b16 %v256
    %v486 = vunpack.c.h.b16 %v256
    %v487 = vunpack.c.l.b16 %v257
    %v488 = vunpack.c.l.b16 %v258
    %v489 = vunpack.c.h.b16 %v258
    %v490 = vunpack.c.l.b16 %v259
    %v491 = vunpack.c.l.b16 %v260
    %v492 = vunpack.c.h.b16 %v260
    %v493 = vunpack.c.l.b16 %v261
    %v494 = vunpack.c.l.b16 %v262
    %v495 = vunpack.c.h.b16 %v262
    %v496 = vunpack.c.l.b16 %v263
    %v497 = vunpack.c.l.b16 %v264
    %v498 = vunpack.c.h.b16 %v264
    %v499 = vunpack.c.l.b16 %v265
    %v500 = vunpack.c.l.b16 %v266
    %v501 = vunpack.c.h.b16 %v266
    %v502 = vunpack.c.l.b16 %v267
    %v503 = vunpack.c.l.b16 %v268
    %v504 = vunpack.c.h.b16 %v268
    %v505 = vunpack.c.l.b16 %v269
    %v506 = vunpack.c.l.b16 %v270
    %v507 = vunpack.c.h.b16 %v270
    %v508 = vunpack.c.l.b16 %v271
    %v509 = vunpack.c.l.b16 %v272
    %v510 = vunpack.c.h.b16 %v272
    %v511 = vunpack.c.l.b16 %v273
    %v512 = vunpack.c.l.b16 %v274
    %v513 = vunpack.c.h.b16 %v274
    %v514 = vunpack.c.l.b16 %v275
    %v515 = vunpack.c.l.b16 %v276
    %v516 = vunpack.c.h.b16 %v276
    %v517 = vunpack.c.l.b16 %v277
    %v518 = vunpack.c.l.b16 %v278
    %v519 = vunpack.c.h.b16 %v278
    %v520 = vunpack.c.l.b16 %v279
    %v521 = vunpack.c.l.b16 %v280
    %v522 = vunpack.c.h.b16 %v280
    %v523 = vunpack.c.l.b16 %v281
    %v524 = vunpack.c.l.b16 %v282
    %v525 = vunpack.c.h.b16 %v282
    %v526 = vunpack.c.l.b16 %v283
    %v527 = vunpack.c.l.b16 %v284
    %v528 = vunpack.c.h.b16 %v284
    %v529 = vunpack.c.l.b16 %v285
    %v530 = vunpack.c.l.b16 %v286
    %v531 = vunpack.c.h.b16 %v286
    %v532 = vunpack.c.l.b16 %v287
    %v533 = vunpack.c.l.b16 %v288
    %v534 = vunpack.c.h.b16 %v288
    %v535 = vunpack.c.l.b16 %v289
    %v536 = vunpack.c.l.b16 %v290
    %v537 = vunpack.c.h.b16 %v290
    %v538 = vunpack.c.l.b16 %v291
    %v539 = vunpack.c.l.b16 %v292
    %v540 = vunpack.c.h.b16 %v292
    %v541 = vunpack.c.l.b16 %v293
    %v542 = vunpack.c.l.b16 %v294
    %v543 = vunpack.c.h.b16 %v294
    %v544 = vunpack.c.l.b16 %v295
    %v545 = vunpack.c.l.b16 %v296
    %v546 = vunpack.c.h.b16 %v296
    %v547 = vunpack.c.l.b16 %v297
    %v548 = vunpack.c.l.b16 %v298
    %v549 = vunpack.c.h.b16 %v298
    %v550 = vunpack.c.l.b16 %v299
    %v551 = vunpack.c.l.b16 %v300
    %v552 = vunpack.c.h.b16 %v300
    %v553 = vunpack.c.l.b16 %v301
    %v554 = vunpack.c.l.b16 %v302
    %v555 = vunpack.c.h.b16 %v302
    %v556 = vunpack.c.l.b16 %v303
    %v557 = vunpack.c.l.b16 %v304
    %v558 = vunpack.c.h.b16 %v304
    %v559 = vunpack.c.l.b16 %v305
    %v560 = vunpack.c.l.b16 %v306
    %v561 = vunpack.c.h.b16 %v306
    %v562 = vunpack.c.l.b16 %v307
    %v563 = vunpack.c.l.b16 %v308
    %v564 = vunpack.c.h.b16 %v308
    %v565 = vunpack.c.l.b16 %v309
    %v566 = vunpack.c.l.b16 %v310
    %v567 = vunpack.c.h.b16 %v310
    %v568 = vunpack.c.l.b16 %v311
    %v569 = vpack.c.b16 %v428, %v425
    %v570 = vpack.c.b16 %v429, %v426
    %v571 = vpack.c.b16 %v430, %v427
    %v572 = vpack.c.b16 %v434, %v431
    %v573 = vpack.c.b16 %v435, %v432
    %v574 = vpack.c.b16 %v436, %v433
    %v575 = vpack.c.b16 %v440, %v437
    %v576 = vpack.c.b16 %v441, %v438
    %v577 = vpack.c.b16 %v442, %v439
    %v578 = vpack.c.b16 %v446, %v443
    %v579 = vpack.c.b16 %v447, %v444
    %v580 = vpack.c.b16 %v448, %v445
    %v581 = vpack.c.b16 %v452, %v449
    %v582 = vpack.c.b16 %v453, %v450
    %v583 = vpack.c.b16 %v454, %v451
    %v584 = vpack.c.b16 %v458, %v455
    %v585 = vpack.c.b16 %v459, %v456
    %v586 = vpack.c.b16 %v460, %v457
    %v587 = vpack.c.b16 %v464, %v461
    %v588 = vpack.c.b16 %v465, %v462
    %v589 = vpack.c.b16 %v466, %v463
    %v590 = vpack.c.b16 %v470, %v467
    %v591 = vpack.c.b16 %v471, %v468
    %v592 = vpack.c.b16 %v472, %v469
    %v593 = vpack.c.b16 %v476, %v473
    %v594 = vpack.c.b16 %v477, %v474
    %v595 = vpack.c.b16 %v478, %v475
    %v596 = vpack.c.b16 %v482, %v479
    %v597 = vpack.c.b16 %v483, %v480
    %v598 = vpack.c.b16 %v484, %v481
    %v599 = vpack.c.b16 %v488, %v485
    %v600 = vpack.c.b16 %v489, %v486
    %v601 = vpack.c.b16 %v490, %v487
    %v602 = vpack.c.b16 %v494, %v491
    %v603 = vpack.c.b16 %v495, %v492
    %v604 = vpack.c.b16 %v496, %v493
    %v605 = vpack.c.b16 %v500, %v497
    %v606 = vpack.c.b16 %v501, %v498
    %v607 = vpack.c.b16 %v502, %v499
    %v608 = vpack.c.b16 %v506, %v503
    %v609 = vpack.c.b16 %v507, %v504
    %v610 = vpack.c.b16 %v508, %v505
    %v611 = vpack.c.b16 %v512, %v509
    %v612 = vpack.c.b16 %v513, %v510
    %v613 = vpack.c.b16 %v514, %v511
    %v614 = vpack.c.b16 %v518, %v515
    %v615 = vpack.c.b16 %v519, %v516
    %v616 = vpack.c.b16 %v520, %v517
    %v617 = vpack.c.b16 %v524, %v521
    %v618 = vpack.c.b16 %v525, %v522
    %v619 = vpack.c.b16 %v526, %v523
    %v620 = vpack.c.b16 %v530, %v527
    %v621 = vpack.c.b16 %v531, %v528
    %v622 = vpack.c.b16 %v532, %v529
    %v623 = vpack.c.b16 %v536, %v533
    %v624 = vpack.c.b16 %v537, %v534
    %v625 = vpack.c.b16 %v538, %v535
    %v626 = vpack.c.b16 %v542, %v539
    %v627 = vpack.c.b16 %v543, %v540
    %v628 = vpack.c.b16 %v544, %v541
    %v629 = vpack.c.b16 %v548, %v545
    %v630 = vpack.c.b16 %v549, %v546
    %v631 = vpack.c.b16 %v550, %v547
    %v632 = vpack.c.b16 %v554, %v551
    %v633 = vpack.c.b16 %v555, %v552
    %v634 = vpack.c.b16 %v556, %v553
    %v635 = vpack.c.b16 %v560, %v557
    %v636 = vpack.c.b16 %v561, %v558
    %v637 = vpack.c.b16 %v562, %v559
    %v638 = vpack.c.b16 %v566, %v563
    %v639 = vpack.c.b16 %v567, %v564
    %v640 = vpack.c.b16 %v568, %v565
    %713 = vmatprep.subr.bf16.mxu0 %v591
    %714 = vmatpush1.bf16.msra.mxu0 %v590
    %715 = vmatprep.subr.bf16.mxu0 %v588
    %716 = vmatpush1.bf16.msra.mxu0 %v587
    %717 = vmatprep.subr.bf16.mxu0 %v585
    %718 = vmatpush1.bf16.msra.mxu0 %v584
    %719 = vmatprep.subr.bf16.mxu0 %v582
    %720 = vmatpush1.bf16.msra.mxu0 %v581
    %721 = vmatprep.subr.bf16.mxu0 %v579
    %722 = vmatpush1.bf16.msra.mxu0 %v578
    %723 = vmatprep.subr.bf16.mxu0 %v576
    %724 = vmatpush1.bf16.msra.mxu0 %v575
    %725 = vmatprep.subr.bf16.mxu0 %v573
    %726 = vmatpush1.bf16.msra.mxu0 %v572
    %727 = vmatprep.subr.bf16.mxu0 %v570
    %728 = vmatpush1.bf16.msra.mxu0 %v569
    %729 = vmatprep.subr.bf16.mxu0 %v615
    %730 = vmatpush2.bf16.msra.mxu0 %v614
    %731 = vmatprep.subr.bf16.mxu0 %v612
    %732 = vmatpush2.bf16.msra.mxu0 %v611
    %733 = vmatprep.subr.bf16.mxu0 %v609
    %734 = vmatpush2.bf16.msra.mxu0 %v608
    %735 = vmatprep.subr.bf16.mxu0 %v606
    %736 = vmatpush2.bf16.msra.mxu0 %v605
    %737 = vmatprep.subr.bf16.mxu0 %v603
    %738 = vmatpush2.bf16.msra.mxu0 %v602
    %739 = vmatprep.subr.bf16.mxu0 %v600
    %740 = vmatpush2.bf16.msra.mxu0 %v599
    %741 = vmatprep.subr.bf16.mxu0 %v597
    %742 = vmatpush2.bf16.msra.mxu0 %v596
    %743 = vmatprep.subr.bf16.mxu0 %v594
    %744 = vmatpush2.bf16.msra.mxu0 %v593
    %745 = vmatprep.mubr.bf16.mxu0 %v214
    %746 = vmatmul.mubr.bf16.gmra.mxu0 %v213
    %v747 = vpop.f32.mrf.mxu0
    %v748 = vadd.f32 %v317, %v747
    %v749 = vpop.f32.mrf.mxu0
    %v750 = vadd.f32 %v321, %v749
    %v751 = vpop.f32.mrf.mxu0
    %v752 = vpop.f32.mrf.mxu0
    %753 = vdwg.mxu0
    %754 = vmatprep.subr.bf16.mxu0 %v639
    %755 = vmatpush1.bf16.msra.mxu0 %v638
    %756 = vmatprep.subr.bf16.mxu0 %v636
    %757 = vmatpush1.bf16.msra.mxu0 %v635
    %758 = vmatprep.subr.bf16.mxu0 %v633
    %759 = vmatpush1.bf16.msra.mxu0 %v632
    %760 = vmatprep.subr.bf16.mxu0 %v630
    %761 = vmatpush1.bf16.msra.mxu0 %v629
    %762 = vmatprep.subr.bf16.mxu0 %v627
    %763 = vmatpush1.bf16.msra.mxu0 %v626
    %764 = vmatprep.subr.bf16.mxu0 %v624
    %765 = vmatpush1.bf16.msra.mxu0 %v623
    %766 = vmatprep.subr.bf16.mxu0 %v621
    %767 = vmatpush1.bf16.msra.mxu0 %v620
    %768 = vmatprep.subr.bf16.mxu0 %v618
    %769 = vmatpush1.bf16.msra.mxu0 %v617
    %770 = vmatprep.subr.bf16.mxu0 0
    %771 = vmatpush2.bf16.msra.mxu0 0
    %772 = vmatprep.subr.bf16.mxu0 0
    %773 = vmatpush2.bf16.msra.mxu0 0
    %774 = vmatprep.subr.bf16.mxu0 0
    %775 = vmatpush2.bf16.msra.mxu0 0
    %776 = vmatprep.subr.bf16.mxu0 0
    %777 = vmatpush2.bf16.msra.mxu0 0
    %778 = vmatprep.subr.bf16.mxu0 0
    %779 = vmatpush2.bf16.msra.mxu0 0
    %780 = vmatprep.subr.bf16.mxu0 0
    %781 = vmatpush2.bf16.msra.mxu0 0
    %782 = vmatprep.subr.bf16.mxu0 0
    %783 = vmatpush2.bf16.msra.mxu0 0
    %784 = vmatprep.subr.bf16.mxu0 0
    %785 = vmatpush2.bf16.msra.mxu0 0
    %786 = vmatprep.mubr.bf16.mxu0 0
    %787 = vmatmul.mubr.bf16.gmra.mxu0 %v215
    %v788 = vpop.f32.mrf.mxu0
    %v789 = vadd.f32 %v748, %v788
    %v790 = vpop.f32.mrf.mxu0
    %v791 = vadd.f32 %v750, %v790
    %v792 = vpop.f32.mrf.mxu0
    %v793 = vpop.f32.mrf.mxu0
    %794 = vdwg.mxu0
    %795 = vmatprep.subr.bf16.mxu0 0
    %796 = vmatpush1.bf16.msra.mxu0 %v592
    %797 = vmatprep.subr.bf16.mxu0 0
    %798 = vmatpush1.bf16.msra.mxu0 %v589
    %799 = vmatprep.subr.bf16.mxu0 0
    %800 = vmatpush1.bf16.msra.mxu0 %v586
    %801 = vmatprep.subr.bf16.mxu0 0
    %802 = vmatpush1.bf16.msra.mxu0 %v583
    %803 = vmatprep.subr.bf16.mxu0 0
    %804 = vmatpush1.bf16.msra.mxu0 %v580
    %805 = vmatprep.subr.bf16.mxu0 0
    %806 = vmatpush1.bf16.msra.mxu0 %v577
    %807 = vmatprep.subr.bf16.mxu0 0
    %808 = vmatpush1.bf16.msra.mxu0 %v574
    %809 = vmatprep.subr.bf16.mxu0 0
    %810 = vmatpush1.bf16.msra.mxu0 %v571
    %811 = vmatprep.subr.bf16.mxu0 0
    %812 = vmatpush2.bf16.msra.mxu0 %v616
    %813 = vmatprep.subr.bf16.mxu0 0
    %814 = vmatpush2.bf16.msra.mxu0 %v613
    %815 = vmatprep.subr.bf16.mxu0 0
    %816 = vmatpush2.bf16.msra.mxu0 %v610
    %817 = vmatprep.subr.bf16.mxu0 0
    %818 = vmatpush2.bf16.msra.mxu0 %v607
    %819 = vmatprep.subr.bf16.mxu0 0
    %820 = vmatpush2.bf16.msra.mxu0 %v604
    %821 = vmatprep.subr.bf16.mxu0 0
    %822 = vmatpush2.bf16.msra.mxu0 %v601
    %823 = vmatprep.subr.bf16.mxu0 0
    %824 = vmatpush2.bf16.msra.mxu0 %v598
    %825 = vmatprep.subr.bf16.mxu0 0
    %826 = vmatpush2.bf16.msra.mxu0 %v595
    %827 = vmatprep.mubr.bf16.mxu0 %v214
    %828 = vmatmul.mubr.bf16.gmra.mxu0 %v213
    %v829 = vpop.f32.mrf.mxu0
    %v830 = vadd.f32 %v325, %v829
    %v831 = vpop.f32.mrf.mxu0
    %v832 = vpop.f32.mrf.mxu0
    %v833 = vpop.f32.mrf.mxu0
    %834 = vdwg.mxu0
    %835 = vmatprep.subr.bf16.mxu0 0
    %836 = vmatpush1.bf16.msra.mxu0 %v640
    %837 = vmatprep.subr.bf16.mxu0 0
    %838 = vmatpush1.bf16.msra.mxu0 %v637
    %839 = vmatprep.subr.bf16.mxu0 0
    %840 = vmatpush1.bf16.msra.mxu0 %v634
    %841 = vmatprep.subr.bf16.mxu0 0
    %842 = vmatpush1.bf16.msra.mxu0 %v631
    %843 = vmatprep.subr.bf16.mxu0 0
    %844 = vmatpush1.bf16.msra.mxu0 %v628
    %845 = vmatprep.subr.bf16.mxu0 0
    %846 = vmatpush1.bf16.msra.mxu0 %v625
    %847 = vmatprep.subr.bf16.mxu0 0
    %848 = vmatpush1.bf16.msra.mxu0 %v622
    %849 = vmatprep.subr.bf16.mxu0 0
    %850 = vmatpush1.bf16.msra.mxu0 %v619
    %851 = vmatprep.subr.bf16.mxu0 0
    %852 = vmatpush2.bf16.msra.mxu0 0
    %853 = vmatprep.subr.bf16.mxu0 0
    %854 = vmatpush2.bf16.msra.mxu0 0
    %855 = vmatprep.subr.bf16.mxu0 0
    %856 = vmatpush2.bf16.msra.mxu0 0
    %857 = vmatprep.subr.bf16.mxu0 0
    %858 = vmatpush2.bf16.msra.mxu0 0
    %859 = vmatprep.subr.bf16.mxu0 0
    %860 = vmatpush2.bf16.msra.mxu0 0
    %861 = vmatprep.subr.bf16.mxu0 0
    %862 = vmatpush2.bf16.msra.mxu0 0
    %863 = vmatprep.subr.bf16.mxu0 0
    %864 = vmatpush2.bf16.msra.mxu0 0
    %865 = vmatprep.subr.bf16.mxu0 0
    %866 = vmatpush2.bf16.msra.mxu0 0
    %867 = vmatprep.mubr.bf16.mxu0 0
    %868 = vmatmul.mubr.bf16.gmra.mxu0 %v215
    %v869 = vpop.f32.mrf.mxu0
    %v870 = vadd.f32 %v830, %v869
    %v871 = vpop.f32.mrf.mxu0
    %v872 = vpop.f32.mrf.mxu0
    %v873 = vpop.f32.mrf.mxu0
    %874 = vdwg.mxu0
    %v875 = vmax.f32 %v789, 0.0
    %v876 = vmax.f32 %v791, 0.0
    %v877 = vmax.f32 %v870, 0.0
    %v878 = vpack.c.bf16 %v875, %v875
    %v879 = vpack.c.bf16 %v876, %v876
    %v880 = vpack.c.bf16 %v877, %v877
    %v881 = vld [vmem:[#allocation6] sm:$0xff]
    %v882 = vld [vmem:[#allocation6 + $0x8] sm:$0xf]
    %v883 = vld [vmem:[#allocation6 + $0xc] sm:$0xff]
    %v884 = vld [vmem:[#allocation6 + $0x14] sm:$0xf]
    %v885 = vld [vmem:[#allocation6 + $0x18] sm:$0xff]
    %v886 = vld [vmem:[#allocation6 + $0x20] sm:$0xf]
    %v887 = vld [vmem:[#allocation6 + $0x24] sm:$0xff]
    %v888 = vld [vmem:[#allocation6 + $0x2c] sm:$0xf]
    %v889 = vld [vmem:[#allocation6 + $0x30] sm:$0xff]
    %v890 = vld [vmem:[#allocation6 + $0x38] sm:$0xf]
    %v891 = vld [vmem:[#allocation6 + $0x3c] sm:$0xff]
    %v892 = vld [vmem:[#allocation6 + $0x44] sm:$0xf]
    %v893 = vld [vmem:[#allocation6 + $0x48] sm:$0xff]
    %v894 = vld [vmem:[#allocation6 + $0x50] sm:$0xf]
    %v895 = vld [vmem:[#allocation6 + $0x54] sm:$0xff]
    %v896 = vld [vmem:[#allocation6 + $0x5c] sm:$0xf]
    %v897 = vld [vmem:[#allocation6 + $0x60] sm:$0xff]
    %v898 = vld [vmem:[#allocation6 + $0x68] sm:$0xf]
    %v899 = vld [vmem:[#allocation6 + $0x6c] sm:$0xff]
    %v900 = vld [vmem:[#allocation6 + $0x74] sm:$0xf]
    %v901 = vld [vmem:[#allocation6 + $0x78] sm:$0xff]
    %v902 = vld [vmem:[#allocation6 + $0x80] sm:$0xf]
    %v903 = vld [vmem:[#allocation6 + $0x84] sm:$0xff]
    %v904 = vld [vmem:[#allocation6 + $0x8c] sm:$0xf]
    %v905 = vld [vmem:[#allocation6 + $0x90] sm:$0xff]
    %v906 = vld [vmem:[#allocation6 + $0x98] sm:$0xf]
    %v907 = vld [vmem:[#allocation6 + $0x9c] sm:$0xff]
    %v908 = vld [vmem:[#allocation6 + $0xa4] sm:$0xf]
    %v909 = vld [vmem:[#allocation6 + $0xa8] sm:$0xff]
    %v910 = vld [vmem:[#allocation6 + $0xb0] sm:$0xf]
    %v911 = vld [vmem:[#allocation6 + $0xb4] sm:$0xff]
    %v912 = vld [vmem:[#allocation6 + $0xbc] sm:$0xf]
    %v913 = vld [vmem:[#allocation6 + $0xc0] sm:$0xff]
    %v914 = vld [vmem:[#allocation6 + $0xc8] sm:$0xf]
    %v915 = vld [vmem:[#allocation6 + $0xcc] sm:$0xff]
    %v916 = vld [vmem:[#allocation6 + $0xd4] sm:$0xf]
    %v917 = vld [vmem:[#allocation6 + $0xd8] sm:$0xff]
    %v918 = vld [vmem:[#allocation6 + $0xe0] sm:$0xf]
    %v919 = vld [vmem:[#allocation6 + $0xe4] sm:$0xff]
    %v920 = vld [vmem:[#allocation6 + $0xec] sm:$0xf]
    %v921 = vld [vmem:[#allocation6 + $0xf0] sm:$0xff]
    %v922 = vld [vmem:[#allocation6 + $0xf8] sm:$0xf]
    %v923 = vld [vmem:[#allocation6 + $0xfc] sm:$0xff]
    %v924 = vld [vmem:[#allocation6 + $0x104] sm:$0xf]
    %v925 = vld [vmem:[#allocation6 + $0x108] sm:$0xff]
    %v926 = vld [vmem:[#allocation6 + $0x110] sm:$0xf]
    %v927 = vld [vmem:[#allocation6 + $0x114] sm:$0xff]
    %v928 = vld [vmem:[#allocation6 + $0x11c] sm:$0xf]
    %v929 = vld [vmem:[#allocation6 + $0x120] sm:$0xff]
    %v930 = vld [vmem:[#allocation6 + $0x128] sm:$0xf]
    %v931 = vld [vmem:[#allocation6 + $0x12c] sm:$0xff]
    %v932 = vld [vmem:[#allocation6 + $0x134] sm:$0xf]
    %v933 = vld [vmem:[#allocation6 + $0x138] sm:$0xff]
    %v934 = vld [vmem:[#allocation6 + $0x140] sm:$0xf]
    %v935 = vld [vmem:[#allocation6 + $0x144] sm:$0xff]
    %v936 = vld [vmem:[#allocation6 + $0x14c] sm:$0xf]
    %v937 = vld [vmem:[#allocation6 + $0x150] sm:$0xff]
    %v938 = vld [vmem:[#allocation6 + $0x158] sm:$0xf]
    %v939 = vld [vmem:[#allocation6 + $0x15c] sm:$0xff]
    %v940 = vld [vmem:[#allocation6 + $0x164] sm:$0xf]
    %v941 = vld [vmem:[#allocation6 + $0x168] sm:$0xff]
    %v942 = vld [vmem:[#allocation6 + $0x170] sm:$0xf]
    %v943 = vld [vmem:[#allocation6 + $0x174] sm:$0xff]
    %v944 = vld [vmem:[#allocation6 + $0x17c] sm:$0xf]
    %v945 = vld [vmem:[#allocation6 + $0x180] sm:$0xff]
    %v946 = vld [vmem:[#allocation6 + $0x188] sm:$0xf]
    %v947 = vld [vmem:[#allocation6 + $0x18c] sm:$0xff]
    %v948 = vld [vmem:[#allocation6 + $0x194] sm:$0xf]
    %v949 = vld [vmem:[#allocation6 + $0x198] sm:$0xff]
    %v950 = vld [vmem:[#allocation6 + $0x1a0] sm:$0xf]
    %v951 = vld [vmem:[#allocation6 + $0x1a4] sm:$0xff]
    %v952 = vld [vmem:[#allocation6 + $0x1ac] sm:$0xf]
    %v953 = vld [vmem:[#allocation6 + $0x1b0] sm:$0xff]
    %v954 = vld [vmem:[#allocation6 + $0x1b8] sm:$0xf]
    %v955 = vld [vmem:[#allocation6 + $0x1bc] sm:$0xff]
    %v956 = vld [vmem:[#allocation6 + $0x1c4] sm:$0xf]
    %v957 = vld [vmem:[#allocation6 + $0x1c8] sm:$0xff]
    %v958 = vld [vmem:[#allocation6 + $0x1d0] sm:$0xf]
    %v959 = vld [vmem:[#allocation6 + $0x1d4] sm:$0xff]
    %v960 = vld [vmem:[#allocation6 + $0x1dc] sm:$0xf]
    %v961 = vld [vmem:[#allocation6 + $0x1e0] sm:$0xff]
    %v962 = vld [vmem:[#allocation6 + $0x1e8] sm:$0xf]
    %v963 = vld [vmem:[#allocation6 + $0x1ec] sm:$0xff]
    %v964 = vld [vmem:[#allocation6 + $0x1f4] sm:$0xf]
    %v965 = vld [vmem:[#allocation6 + $0x1f8] sm:$0xff]
    %v966 = vld [vmem:[#allocation6 + $0x200] sm:$0xf]
    %v967 = vld [vmem:[#allocation6 + $0x204] sm:$0xff]
    %v968 = vld [vmem:[#allocation6 + $0x20c] sm:$0xf]
    %v969 = vld [vmem:[#allocation6 + $0x210] sm:$0xff]
    %v970 = vld [vmem:[#allocation6 + $0x218] sm:$0xf]
    %v971 = vld [vmem:[#allocation6 + $0x21c] sm:$0xff]
    %v972 = vld [vmem:[#allocation6 + $0x224] sm:$0xf]
    %v973 = vld [vmem:[#allocation6 + $0x228] sm:$0xff]
    %v974 = vld [vmem:[#allocation6 + $0x230] sm:$0xf]
    %v975 = vld [vmem:[#allocation6 + $0x234] sm:$0xff]
    %v976 = vld [vmem:[#allocation6 + $0x23c] sm:$0xf]
    %v977 = vld [vmem:[%s6] sm:$0x7]
    %v979 = vlaneseq
    %v980 = vshrl.u32 %v979, 7
    %v981 = vsub.s32 0, %v980
    %v982 = vrot.slane %v977, %v981
    %v983 = vlaneseq
    %v984 = vshrl.u32 %v983, 7
    %v985 = vsub.s32 1, %v984
    %v986 = vrot.slane %v977, %v985
    %v987 = vlaneseq
    %v988 = vshrl.u32 %v987, 7
    %v989 = vsub.s32 2, %v988
    %v990 = vrot.slane %v977, %v989
    %v1090 = vunpack.c.l.b16 %v881
    %v1091 = vunpack.c.h.b16 %v881
    %v1092 = vunpack.c.l.b16 %v882
    %v1093 = vunpack.c.l.b16 %v883
    %v1094 = vunpack.c.h.b16 %v883
    %v1095 = vunpack.c.l.b16 %v884
    %v1096 = vunpack.c.l.b16 %v885
    %v1097 = vunpack.c.h.b16 %v885
    %v1098 = vunpack.c.l.b16 %v886
    %v1099 = vunpack.c.l.b16 %v887
    %v1100 = vunpack.c.h.b16 %v887
    %v1101 = vunpack.c.l.b16 %v888
    %v1102 = vunpack.c.l.b16 %v889
    %v1103 = vunpack.c.h.b16 %v889
    %v1104 = vunpack.c.l.b16 %v890
    %v1105 = vunpack.c.l.b16 %v891
    %v1106 = vunpack.c.h.b16 %v891
    %v1107 = vunpack.c.l.b16 %v892
    %v1108 = vunpack.c.l.b16 %v893
    %v1109 = vunpack.c.h.b16 %v893
    %v1110 = vunpack.c.l.b16 %v894
    %v1111 = vunpack.c.l.b16 %v895
    %v1112 = vunpack.c.h.b16 %v895
    %v1113 = vunpack.c.l.b16 %v896
    %v1114 = vunpack.c.l.b16 %v897
    %v1115 = vunpack.c.h.b16 %v897
    %v1116 = vunpack.c.l.b16 %v898
    %v1117 = vunpack.c.l.b16 %v899
    %v1118 = vunpack.c.h.b16 %v899
    %v1119 = vunpack.c.l.b16 %v900
    %v1120 = vunpack.c.l.b16 %v901
    %v1121 = vunpack.c.h.b16 %v901
    %v1122 = vunpack.c.l.b16 %v902
    %v1123 = vunpack.c.l.b16 %v903
    %v1124 = vunpack.c.h.b16 %v903
    %v1125 = vunpack.c.l.b16 %v904
    %v1126 = vunpack.c.l.b16 %v905
    %v1127 = vunpack.c.h.b16 %v905
    %v1128 = vunpack.c.l.b16 %v906
    %v1129 = vunpack.c.l.b16 %v907
    %v1130 = vunpack.c.h.b16 %v907
    %v1131 = vunpack.c.l.b16 %v908
    %v1132 = vunpack.c.l.b16 %v909
    %v1133 = vunpack.c.h.b16 %v909
    %v1134 = vunpack.c.l.b16 %v910
    %v1135 = vunpack.c.l.b16 %v911
    %v1136 = vunpack.c.h.b16 %v911
    %v1137 = vunpack.c.l.b16 %v912
    %v1138 = vunpack.c.l.b16 %v913
    %v1139 = vunpack.c.h.b16 %v913
    %v1140 = vunpack.c.l.b16 %v914
    %v1141 = vunpack.c.l.b16 %v915
    %v1142 = vunpack.c.h.b16 %v915
    %v1143 = vunpack.c.l.b16 %v916
    %v1144 = vunpack.c.l.b16 %v917
    %v1145 = vunpack.c.h.b16 %v917
    %v1146 = vunpack.c.l.b16 %v918
    %v1147 = vunpack.c.l.b16 %v919
    %v1148 = vunpack.c.h.b16 %v919
    %v1149 = vunpack.c.l.b16 %v920
    %v1150 = vunpack.c.l.b16 %v921
    %v1151 = vunpack.c.h.b16 %v921
    %v1152 = vunpack.c.l.b16 %v922
    %v1153 = vunpack.c.l.b16 %v923
    %v1154 = vunpack.c.h.b16 %v923
    %v1155 = vunpack.c.l.b16 %v924
    %v1156 = vunpack.c.l.b16 %v925
    %v1157 = vunpack.c.h.b16 %v925
    %v1158 = vunpack.c.l.b16 %v926
    %v1159 = vunpack.c.l.b16 %v927
    %v1160 = vunpack.c.h.b16 %v927
    %v1161 = vunpack.c.l.b16 %v928
    %v1162 = vunpack.c.l.b16 %v929
    %v1163 = vunpack.c.h.b16 %v929
    %v1164 = vunpack.c.l.b16 %v930
    %v1165 = vunpack.c.l.b16 %v931
    %v1166 = vunpack.c.h.b16 %v931
    %v1167 = vunpack.c.l.b16 %v932
    %v1168 = vunpack.c.l.b16 %v933
    %v1169 = vunpack.c.h.b16 %v933
    %v1170 = vunpack.c.l.b16 %v934
    %v1171 = vunpack.c.l.b16 %v935
    %v1172 = vunpack.c.h.b16 %v935
    %v1173 = vunpack.c.l.b16 %v936
    %v1174 = vunpack.c.l.b16 %v937
    %v1175 = vunpack.c.h.b16 %v937
    %v1176 = vunpack.c.l.b16 %v938
    %v1177 = vunpack.c.l.b16 %v939
    %v1178 = vunpack.c.h.b16 %v939
    %v1179 = vunpack.c.l.b16 %v940
    %v1180 = vunpack.c.l.b16 %v941
    %v1181 = vunpack.c.h.b16 %v941
    %v1182 = vunpack.c.l.b16 %v942
    %v1183 = vunpack.c.l.b16 %v943
    %v1184 = vunpack.c.h.b16 %v943
    %v1185 = vunpack.c.l.b16 %v944
    %v1186 = vunpack.c.l.b16 %v945
    %v1187 = vunpack.c.h.b16 %v945
    %v1188 = vunpack.c.l.b16 %v946
    %v1189 = vunpack.c.l.b16 %v947
    %v1190 = vunpack.c.h.b16 %v947
    %v1191 = vunpack.c.l.b16 %v948
    %v1192 = vunpack.c.l.b16 %v949
    %v1193 = vunpack.c.h.b16 %v949
    %v1194 = vunpack.c.l.b16 %v950
    %v1195 = vunpack.c.l.b16 %v951
    %v1196 = vunpack.c.h.b16 %v951
    %v1197 = vunpack.c.l.b16 %v952
    %v1198 = vunpack.c.l.b16 %v953
    %v1199 = vunpack.c.h.b16 %v953
    %v1200 = vunpack.c.l.b16 %v954
    %v1201 = vunpack.c.l.b16 %v955
    %v1202 = vunpack.c.h.b16 %v955
    %v1203 = vunpack.c.l.b16 %v956
    %v1204 = vunpack.c.l.b16 %v957
    %v1205 = vunpack.c.h.b16 %v957
    %v1206 = vunpack.c.l.b16 %v958
    %v1207 = vunpack.c.l.b16 %v959
    %v1208 = vunpack.c.h.b16 %v959
    %v1209 = vunpack.c.l.b16 %v960
    %v1210 = vunpack.c.l.b16 %v961
    %v1211 = vunpack.c.h.b16 %v961
    %v1212 = vunpack.c.l.b16 %v962
    %v1213 = vunpack.c.l.b16 %v963
    %v1214 = vunpack.c.h.b16 %v963
    %v1215 = vunpack.c.l.b16 %v964
    %v1216 = vunpack.c.l.b16 %v965
    %v1217 = vunpack.c.h.b16 %v965
    %v1218 = vunpack.c.l.b16 %v966
    %v1219 = vunpack.c.l.b16 %v967
    %v1220 = vunpack.c.h.b16 %v967
    %v1221 = vunpack.c.l.b16 %v968
    %v1222 = vunpack.c.l.b16 %v969
    %v1223 = vunpack.c.h.b16 %v969
    %v1224 = vunpack.c.l.b16 %v970
    %v1225 = vunpack.c.l.b16 %v971
    %v1226 = vunpack.c.h.b16 %v971
    %v1227 = vunpack.c.l.b16 %v972
    %v1228 = vunpack.c.l.b16 %v973
    %v1229 = vunpack.c.h.b16 %v973
    %v1230 = vunpack.c.l.b16 %v974
    %v1231 = vunpack.c.l.b16 %v975
    %v1232 = vunpack.c.h.b16 %v975
    %v1233 = vunpack.c.l.b16 %v976
    %v1234 = vpack.c.b16 %v1093, %v1090
    %v1235 = vpack.c.b16 %v1094, %v1091
    %v1236 = vpack.c.b16 %v1095, %v1092
    %v1237 = vpack.c.b16 %v1099, %v1096
    %v1238 = vpack.c.b16 %v1100, %v1097
    %v1239 = vpack.c.b16 %v1101, %v1098
    %v1240 = vpack.c.b16 %v1105, %v1102
    %v1241 = vpack.c.b16 %v1106, %v1103
    %v1242 = vpack.c.b16 %v1107, %v1104
    %v1243 = vpack.c.b16 %v1111, %v1108
    %v1244 = vpack.c.b16 %v1112, %v1109
    %v1245 = vpack.c.b16 %v1113, %v1110
    %v1246 = vpack.c.b16 %v1117, %v1114
    %v1247 = vpack.c.b16 %v1118, %v1115
    %v1248 = vpack.c.b16 %v1119, %v1116
    %v1249 = vpack.c.b16 %v1123, %v1120
    %v1250 = vpack.c.b16 %v1124, %v1121
    %v1251 = vpack.c.b16 %v1125, %v1122
    %v1252 = vpack.c.b16 %v1129, %v1126
    %v1253 = vpack.c.b16 %v1130, %v1127
    %v1254 = vpack.c.b16 %v1131, %v1128
    %v1255 = vpack.c.b16 %v1135, %v1132
    %v1256 = vpack.c.b16 %v1136, %v1133
    %v1257 = vpack.c.b16 %v1137, %v1134
    %v1258 = vpack.c.b16 %v1141, %v1138
    %v1259 = vpack.c.b16 %v1142, %v1139
    %v1260 = vpack.c.b16 %v1143, %v1140
    %v1261 = vpack.c.b16 %v1147, %v1144
    %v1262 = vpack.c.b16 %v1148, %v1145
    %v1263 = vpack.c.b16 %v1149, %v1146
    %v1264 = vpack.c.b16 %v1153, %v1150
    %v1265 = vpack.c.b16 %v1154, %v1151
    %v1266 = vpack.c.b16 %v1155, %v1152
    %v1267 = vpack.c.b16 %v1159, %v1156
    %v1268 = vpack.c.b16 %v1160, %v1157
    %v1269 = vpack.c.b16 %v1161, %v1158
    %v1270 = vpack.c.b16 %v1165, %v1162
    %v1271 = vpack.c.b16 %v1166, %v1163
    %v1272 = vpack.c.b16 %v1167, %v1164
    %v1273 = vpack.c.b16 %v1171, %v1168
    %v1274 = vpack.c.b16 %v1172, %v1169
    %v1275 = vpack.c.b16 %v1173, %v1170
    %v1276 = vpack.c.b16 %v1177, %v1174
    %v1277 = vpack.c.b16 %v1178, %v1175
    %v1278 = vpack.c.b16 %v1179, %v1176
    %v1279 = vpack.c.b16 %v1183, %v1180
    %v1280 = vpack.c.b16 %v1184, %v1181
    %v1281 = vpack.c.b16 %v1185, %v1182
    %v1282 = vpack.c.b16 %v1189, %v1186
    %v1283 = vpack.c.b16 %v1190, %v1187
    %v1284 = vpack.c.b16 %v1191, %v1188
    %v1285 = vpack.c.b16 %v1195, %v1192
    %v1286 = vpack.c.b16 %v1196, %v1193
    %v1287 = vpack.c.b16 %v1197, %v1194
    %v1288 = vpack.c.b16 %v1201, %v1198
    %v1289 = vpack.c.b16 %v1202, %v1199
    %v1290 = vpack.c.b16 %v1203, %v1200
    %v1291 = vpack.c.b16 %v1207, %v1204
    %v1292 = vpack.c.b16 %v1208, %v1205
    %v1293 = vpack.c.b16 %v1209, %v1206
    %v1294 = vpack.c.b16 %v1213, %v1210
    %v1295 = vpack.c.b16 %v1214, %v1211
    %v1296 = vpack.c.b16 %v1215, %v1212
    %v1297 = vpack.c.b16 %v1219, %v1216
    %v1298 = vpack.c.b16 %v1220, %v1217
    %v1299 = vpack.c.b16 %v1221, %v1218
    %v1300 = vpack.c.b16 %v1225, %v1222
    %v1301 = vpack.c.b16 %v1226, %v1223
    %v1302 = vpack.c.b16 %v1227, %v1224
    %v1303 = vpack.c.b16 %v1231, %v1228
    %v1304 = vpack.c.b16 %v1232, %v1229
    %v1305 = vpack.c.b16 %v1233, %v1230
    %1378 = vmatprep.subr.bf16.mxu0 %v1256
    %1379 = vmatpush1.bf16.msra.mxu0 %v1255
    %1380 = vmatprep.subr.bf16.mxu0 %v1253
    %1381 = vmatpush1.bf16.msra.mxu0 %v1252
    %1382 = vmatprep.subr.bf16.mxu0 %v1250
    %1383 = vmatpush1.bf16.msra.mxu0 %v1249
    %1384 = vmatprep.subr.bf16.mxu0 %v1247
    %1385 = vmatpush1.bf16.msra.mxu0 %v1246
    %1386 = vmatprep.subr.bf16.mxu0 %v1244
    %1387 = vmatpush1.bf16.msra.mxu0 %v1243
    %1388 = vmatprep.subr.bf16.mxu0 %v1241
    %1389 = vmatpush1.bf16.msra.mxu0 %v1240
    %1390 = vmatprep.subr.bf16.mxu0 %v1238
    %1391 = vmatpush1.bf16.msra.mxu0 %v1237
    %1392 = vmatprep.subr.bf16.mxu0 %v1235
    %1393 = vmatpush1.bf16.msra.mxu0 %v1234
    %1394 = vmatprep.subr.bf16.mxu0 %v1280
    %1395 = vmatpush2.bf16.msra.mxu0 %v1279
    %1396 = vmatprep.subr.bf16.mxu0 %v1277
    %1397 = vmatpush2.bf16.msra.mxu0 %v1276
    %1398 = vmatprep.subr.bf16.mxu0 %v1274
    %1399 = vmatpush2.bf16.msra.mxu0 %v1273
    %1400 = vmatprep.subr.bf16.mxu0 %v1271
    %1401 = vmatpush2.bf16.msra.mxu0 %v1270
    %1402 = vmatprep.subr.bf16.mxu0 %v1268
    %1403 = vmatpush2.bf16.msra.mxu0 %v1267
    %1404 = vmatprep.subr.bf16.mxu0 %v1265
    %1405 = vmatpush2.bf16.msra.mxu0 %v1264
    %1406 = vmatprep.subr.bf16.mxu0 %v1262
    %1407 = vmatpush2.bf16.msra.mxu0 %v1261
    %1408 = vmatprep.subr.bf16.mxu0 %v1259
    %1409 = vmatpush2.bf16.msra.mxu0 %v1258
    %1410 = vmatprep.mubr.bf16.mxu0 %v879
    %1411 = vmatmul.mubr.bf16.gmra.mxu0 %v878
    %v1412 = vpop.f32.mrf.mxu0
    %v1413 = vadd.f32 %v982, %v1412
    %v1414 = vpop.f32.mrf.mxu0
    %v1415 = vadd.f32 %v986, %v1414
    %v1416 = vpop.f32.mrf.mxu0
    %v1417 = vpop.f32.mrf.mxu0
    %1418 = vdwg.mxu0
    %1419 = vmatprep.subr.bf16.mxu0 %v1304
    %1420 = vmatpush1.bf16.msra.mxu0 %v1303
    %1421 = vmatprep.subr.bf16.mxu0 %v1301
    %1422 = vmatpush1.bf16.msra.mxu0 %v1300
    %1423 = vmatprep.subr.bf16.mxu0 %v1298
    %1424 = vmatpush1.bf16.msra.mxu0 %v1297
    %1425 = vmatprep.subr.bf16.mxu0 %v1295
    %1426 = vmatpush1.bf16.msra.mxu0 %v1294
    %1427 = vmatprep.subr.bf16.mxu0 %v1292
    %1428 = vmatpush1.bf16.msra.mxu0 %v1291
    %1429 = vmatprep.subr.bf16.mxu0 %v1289
    %1430 = vmatpush1.bf16.msra.mxu0 %v1288
    %1431 = vmatprep.subr.bf16.mxu0 %v1286
    %1432 = vmatpush1.bf16.msra.mxu0 %v1285
    %1433 = vmatprep.subr.bf16.mxu0 %v1283
    %1434 = vmatpush1.bf16.msra.mxu0 %v1282
    %1435 = vmatprep.subr.bf16.mxu0 0
    %1436 = vmatpush2.bf16.msra.mxu0 0
    %1437 = vmatprep.subr.bf16.mxu0 0
    %1438 = vmatpush2.bf16.msra.mxu0 0
    %1439 = vmatprep.subr.bf16.mxu0 0
    %1440 = vmatpush2.bf16.msra.mxu0 0
    %1441 = vmatprep.subr.bf16.mxu0 0
    %1442 = vmatpush2.bf16.msra.mxu0 0
    %1443 = vmatprep.subr.bf16.mxu0 0
    %1444 = vmatpush2.bf16.msra.mxu0 0
    %1445 = vmatprep.subr.bf16.mxu0 0
    %1446 = vmatpush2.bf16.msra.mxu0 0
    %1447 = vmatprep.subr.bf16.mxu0 0
    %1448 = vmatpush2.bf16.msra.mxu0 0
    %1449 = vmatprep.subr.bf16.mxu0 0
    %1450 = vmatpush2.bf16.msra.mxu0 0
    %1451 = vmatprep.mubr.bf16.mxu0 0
    %1452 = vmatmul.mubr.bf16.gmra.mxu0 %v880
    %v1453 = vpop.f32.mrf.mxu0
    %v1454 = vadd.f32 %v1413, %v1453
    %v1455 = vpop.f32.mrf.mxu0
    %v1456 = vadd.f32 %v1415, %v1455
    %v1457 = vpop.f32.mrf.mxu0
    %v1458 = vpop.f32.mrf.mxu0
    %1459 = vdwg.mxu0
    %1460 = vmatprep.subr.bf16.mxu0 0
    %1461 = vmatpush1.bf16.msra.mxu0 %v1257
    %1462 = vmatprep.subr.bf16.mxu0 0
    %1463 = vmatpush1.bf16.msra.mxu0 %v1254
    %1464 = vmatprep.subr.bf16.mxu0 0
    %1465 = vmatpush1.bf16.msra.mxu0 %v1251
    %1466 = vmatprep.subr.bf16.mxu0 0
    %1467 = vmatpush1.bf16.msra.mxu0 %v1248
    %1468 = vmatprep.subr.bf16.mxu0 0
    %1469 = vmatpush1.bf16.msra.mxu0 %v1245
    %1470 = vmatprep.subr.bf16.mxu0 0
    %1471 = vmatpush1.bf16.msra.mxu0 %v1242
    %1472 = vmatprep.subr.bf16.mxu0 0
    %1473 = vmatpush1.bf16.msra.mxu0 %v1239
    %1474 = vmatprep.subr.bf16.mxu0 0
    %1475 = vmatpush1.bf16.msra.mxu0 %v1236
    %1476 = vmatprep.subr.bf16.mxu0 0
    %1477 = vmatpush2.bf16.msra.mxu0 %v1281
    %1478 = vmatprep.subr.bf16.mxu0 0
    %1479 = vmatpush2.bf16.msra.mxu0 %v1278
    %1480 = vmatprep.subr.bf16.mxu0 0
    %1481 = vmatpush2.bf16.msra.mxu0 %v1275
    %1482 = vmatprep.subr.bf16.mxu0 0
    %1483 = vmatpush2.bf16.msra.mxu0 %v1272
    %1484 = vmatprep.subr.bf16.mxu0 0
    %1485 = vmatpush2.bf16.msra.mxu0 %v1269
    %1486 = vmatprep.subr.bf16.mxu0 0
    %1487 = vmatpush2.bf16.msra.mxu0 %v1266
    %1488 = vmatprep.subr.bf16.mxu0 0
    %1489 = vmatpush2.bf16.msra.mxu0 %v1263
    %1490 = vmatprep.subr.bf16.mxu0 0
    %1491 = vmatpush2.bf16.msra.mxu0 %v1260
    %1492 = vmatprep.mubr.bf16.mxu0 %v879
    %1493 = vmatmul.mubr.bf16.gmra.mxu0 %v878
    %v1494 = vpop.f32.mrf.mxu0
    %v1495 = vadd.f32 %v990, %v1494
    %v1496 = vpop.f32.mrf.mxu0
    %v1497 = vpop.f32.mrf.mxu0
    %v1498 = vpop.f32.mrf.mxu0
    %1499 = vdwg.mxu0
    %1500 = vmatprep.subr.bf16.mxu0 0
    %1501 = vmatpush1.bf16.msra.mxu0 %v1305
    %1502 = vmatprep.subr.bf16.mxu0 0
    %1503 = vmatpush1.bf16.msra.mxu0 %v1302
    %1504 = vmatprep.subr.bf16.mxu0 0
    %1505 = vmatpush1.bf16.msra.mxu0 %v1299
    %1506 = vmatprep.subr.bf16.mxu0 0
    %1507 = vmatpush1.bf16.msra.mxu0 %v1296
    %1508 = vmatprep.subr.bf16.mxu0 0
    %1509 = vmatpush1.bf16.msra.mxu0 %v1293
    %1510 = vmatprep.subr.bf16.mxu0 0
    %1511 = vmatpush1.bf16.msra.mxu0 %v1290
    %1512 = vmatprep.subr.bf16.mxu0 0
    %1513 = vmatpush1.bf16.msra.mxu0 %v1287
    %1514 = vmatprep.subr.bf16.mxu0 0
    %1515 = vmatpush1.bf16.msra.mxu0 %v1284
    %1516 = vmatprep.subr.bf16.mxu0 0
    %1517 = vmatpush2.bf16.msra.mxu0 0
    %1518 = vmatprep.subr.bf16.mxu0 0
    %1519 = vmatpush2.bf16.msra.mxu0 0
    %1520 = vmatprep.subr.bf16.mxu0 0
    %1521 = vmatpush2.bf16.msra.mxu0 0
    %1522 = vmatprep.subr.bf16.mxu0 0
    %1523 = vmatpush2.bf16.msra.mxu0 0
    %1524 = vmatprep.subr.bf16.mxu0 0
    %1525 = vmatpush2.bf16.msra.mxu0 0
    %1526 = vmatprep.subr.bf16.mxu0 0
    %1527 = vmatpush2.bf16.msra.mxu0 0
    %1528 = vmatprep.subr.bf16.mxu0 0
    %1529 = vmatpush2.bf16.msra.mxu0 0
    %1530 = vmatprep.subr.bf16.mxu0 0
    %1531 = vmatpush2.bf16.msra.mxu0 0
    %1532 = vmatprep.mubr.bf16.mxu0 0
    %1533 = vmatmul.mubr.bf16.gmra.mxu0 %v880
    %v1534 = vpop.f32.mrf.mxu0
    %v1535 = vadd.f32 %v1495, %v1534
    %v1536 = vpop.f32.mrf.mxu0
    %v1537 = vpop.f32.mrf.mxu0
    %v1538 = vpop.f32.mrf.mxu0
    %1539 = vdwg.mxu0
    %v1540 = vmax.f32 %v1454, 0.0
    %v1541 = vmax.f32 %v1456, 0.0
    %v1542 = vmax.f32 %v1535, 0.0
    %v1543 = vpack.c.bf16 %v1540, %v1540
    %v1544 = vpack.c.bf16 %v1541, %v1541
    %v1545 = vpack.c.bf16 %v1542, %v1542
    %v1546 = vld [vmem:[#allocation7] sm:$0xf]
    %v1547 = vld [vmem:[#allocation7 + $0x4] sm:$0xf]
    %v1548 = vld [vmem:[#allocation7 + $0x8] sm:$0xf]
    %v1549 = vld [vmem:[#allocation7 + $0xc] sm:$0xf]
    %v1550 = vld [vmem:[#allocation7 + $0x10] sm:$0xf]
    %v1551 = vld [vmem:[#allocation7 + $0x14] sm:$0xf]
    %v1552 = vld [vmem:[#allocation7 + $0x18] sm:$0xf]
    %v1553 = vld [vmem:[#allocation7 + $0x1c] sm:$0xf]
    %v1554 = vld [vmem:[#allocation7 + $0x20] sm:$0xf]
    %v1555 = vld [vmem:[#allocation7 + $0x24] sm:$0xf]
    %v1556 = vld [vmem:[#allocation7 + $0x28] sm:$0xf]
    %v1557 = vld [vmem:[#allocation7 + $0x2c] sm:$0xf]
    %v1558 = vld [vmem:[#allocation7 + $0x30] sm:$0xf]
    %v1559 = vld [vmem:[#allocation7 + $0x34] sm:$0xf]
    %v1560 = vld [vmem:[#allocation7 + $0x38] sm:$0xf]
    %v1561 = vld [vmem:[#allocation7 + $0x3c] sm:$0xf]
    %v1562 = vld [vmem:[#allocation7 + $0x40] sm:$0xf]
    %v1563 = vld [vmem:[#allocation7 + $0x44] sm:$0xf]
    %v1564 = vld [vmem:[#allocation7 + $0x48] sm:$0xf]
    %v1565 = vld [vmem:[#allocation7 + $0x4c] sm:$0xf]
    %v1566 = vld [vmem:[#allocation7 + $0x50] sm:$0xf]
    %v1567 = vld [vmem:[#allocation7 + $0x54] sm:$0xf]
    %v1568 = vld [vmem:[#allocation7 + $0x58] sm:$0xf]
    %v1569 = vld [vmem:[#allocation7 + $0x5c] sm:$0xf]
    %v1570 = vld [vmem:[#allocation7 + $0x60] sm:$0xf]
    %v1571 = vld [vmem:[#allocation7 + $0x64] sm:$0xf]
    %v1572 = vld [vmem:[#allocation7 + $0x68] sm:$0xf]
    %v1573 = vld [vmem:[#allocation7 + $0x6c] sm:$0xf]
    %v1574 = vld [vmem:[#allocation7 + $0x70] sm:$0xf]
    %v1575 = vld [vmem:[#allocation7 + $0x74] sm:$0xf]
    %v1576 = vld [vmem:[#allocation7 + $0x78] sm:$0xf]
    %v1577 = vld [vmem:[#allocation7 + $0x7c] sm:$0xf]
    %v1578 = vld [vmem:[#allocation7 + $0x80] sm:$0xf]
    %v1579 = vld [vmem:[#allocation7 + $0x84] sm:$0xf]
    %v1580 = vld [vmem:[#allocation7 + $0x88] sm:$0xf]
    %v1581 = vld [vmem:[#allocation7 + $0x8c] sm:$0xf]
    %v1582 = vld [vmem:[#allocation7 + $0x90] sm:$0xf]
    %v1583 = vld [vmem:[#allocation7 + $0x94] sm:$0xf]
    %v1584 = vld [vmem:[#allocation7 + $0x98] sm:$0xf]
    %v1585 = vld [vmem:[#allocation7 + $0x9c] sm:$0xf]
    %v1586 = vld [vmem:[#allocation7 + $0xa0] sm:$0xf]
    %v1587 = vld [vmem:[#allocation7 + $0xa4] sm:$0xf]
    %v1588 = vld [vmem:[#allocation7 + $0xa8] sm:$0xf]
    %v1589 = vld [vmem:[#allocation7 + $0xac] sm:$0xf]
    %v1590 = vld [vmem:[#allocation7 + $0xb0] sm:$0xf]
    %v1591 = vld [vmem:[#allocation7 + $0xb4] sm:$0xf]
    %v1592 = vld [vmem:[#allocation7 + $0xb8] sm:$0xf]
    %v1593 = vld [vmem:[#allocation7 + $0xbc] sm:$0xf]
    %v1594 = vld [vmem:[%s8] sm:$0x1]
    %v1596 = vlaneseq
    %v1597 = vshrl.u32 %v1596, 7
    %v1598 = vsub.s32 0, %v1597
    %v1599 = vrot.slane %v1594, %v1598
    %v1649 = vunpack.c.l.b16 %v1546
    %v1650 = vunpack.c.l.b16 %v1547
    %v1651 = vunpack.c.l.b16 %v1548
    %v1652 = vunpack.c.l.b16 %v1549
    %v1653 = vunpack.c.l.b16 %v1550
    %v1654 = vunpack.c.l.b16 %v1551
    %v1655 = vunpack.c.l.b16 %v1552
    %v1656 = vunpack.c.l.b16 %v1553
    %v1657 = vunpack.c.l.b16 %v1554
    %v1658 = vunpack.c.l.b16 %v1555
    %v1659 = vunpack.c.l.b16 %v1556
    %v1660 = vunpack.c.l.b16 %v1557
    %v1661 = vunpack.c.l.b16 %v1558
    %v1662 = vunpack.c.l.b16 %v1559
    %v1663 = vunpack.c.l.b16 %v1560
    %v1664 = vunpack.c.l.b16 %v1561
    %v1665 = vunpack.c.l.b16 %v1562
    %v1666 = vunpack.c.l.b16 %v1563
    %v1667 = vunpack.c.l.b16 %v1564
    %v1668 = vunpack.c.l.b16 %v1565
    %v1669 = vunpack.c.l.b16 %v1566
    %v1670 = vunpack.c.l.b16 %v1567
    %v1671 = vunpack.c.l.b16 %v1568
    %v1672 = vunpack.c.l.b16 %v1569
    %v1673 = vunpack.c.l.b16 %v1570
    %v1674 = vunpack.c.l.b16 %v1571
    %v1675 = vunpack.c.l.b16 %v1572
    %v1676 = vunpack.c.l.b16 %v1573
    %v1677 = vunpack.c.l.b16 %v1574
    %v1678 = vunpack.c.l.b16 %v1575
    %v1679 = vunpack.c.l.b16 %v1576
    %v1680 = vunpack.c.l.b16 %v1577
    %v1681 = vunpack.c.l.b16 %v1578
    %v1682 = vunpack.c.l.b16 %v1579
    %v1683 = vunpack.c.l.b16 %v1580
    %v1684 = vunpack.c.l.b16 %v1581
    %v1685 = vunpack.c.l.b16 %v1582
    %v1686 = vunpack.c.l.b16 %v1583
    %v1687 = vunpack.c.l.b16 %v1584
    %v1688 = vunpack.c.l.b16 %v1585
    %v1689 = vunpack.c.l.b16 %v1586
    %v1690 = vunpack.c.l.b16 %v1587
    %v1691 = vunpack.c.l.b16 %v1588
    %v1692 = vunpack.c.l.b16 %v1589
    %v1693 = vunpack.c.l.b16 %v1590
    %v1694 = vunpack.c.l.b16 %v1591
    %v1695 = vunpack.c.l.b16 %v1592
    %v1696 = vunpack.c.l.b16 %v1593
    %v1697 = vpack.c.b16 %v1650, %v1649
    %v1698 = vpack.c.b16 %v1652, %v1651
    %v1699 = vpack.c.b16 %v1654, %v1653
    %v1700 = vpack.c.b16 %v1656, %v1655
    %v1701 = vpack.c.b16 %v1658, %v1657
    %v1702 = vpack.c.b16 %v1660, %v1659
    %v1703 = vpack.c.b16 %v1662, %v1661
    %v1704 = vpack.c.b16 %v1664, %v1663
    %v1705 = vpack.c.b16 %v1666, %v1665
    %v1706 = vpack.c.b16 %v1668, %v1667
    %v1707 = vpack.c.b16 %v1670, %v1669
    %v1708 = vpack.c.b16 %v1672, %v1671
    %v1709 = vpack.c.b16 %v1674, %v1673
    %v1710 = vpack.c.b16 %v1676, %v1675
    %v1711 = vpack.c.b16 %v1678, %v1677
    %v1712 = vpack.c.b16 %v1680, %v1679
    %v1713 = vpack.c.b16 %v1682, %v1681
    %v1714 = vpack.c.b16 %v1684, %v1683
    %v1715 = vpack.c.b16 %v1686, %v1685
    %v1716 = vpack.c.b16 %v1688, %v1687
    %v1717 = vpack.c.b16 %v1690, %v1689
    %v1718 = vpack.c.b16 %v1692, %v1691
    %v1719 = vpack.c.b16 %v1694, %v1693
    %v1720 = vpack.c.b16 %v1696, %v1695
    %1745 = vmatprep.subr.bf16.mxu0 0
    %1746 = vmatpush1.bf16.msra.mxu0 %v1704
    %1747 = vmatprep.subr.bf16.mxu0 0
    %1748 = vmatpush1.bf16.msra.mxu0 %v1703
    %1749 = vmatprep.subr.bf16.mxu0 0
    %1750 = vmatpush1.bf16.msra.mxu0 %v1702
    %1751 = vmatprep.subr.bf16.mxu0 0
    %1752 = vmatpush1.bf16.msra.mxu0 %v1701
    %1753 = vmatprep.subr.bf16.mxu0 0
    %1754 = vmatpush1.bf16.msra.mxu0 %v1700
    %1755 = vmatprep.subr.bf16.mxu0 0
    %1756 = vmatpush1.bf16.msra.mxu0 %v1699
    %1757 = vmatprep.subr.bf16.mxu0 0
    %1758 = vmatpush1.bf16.msra.mxu0 %v1698
    %1759 = vmatprep.subr.bf16.mxu0 0
    %1760 = vmatpush1.bf16.msra.mxu0 %v1697
    %1761 = vmatprep.subr.bf16.mxu0 0
    %1762 = vmatpush2.bf16.msra.mxu0 %v1712
    %1763 = vmatprep.subr.bf16.mxu0 0
    %1764 = vmatpush2.bf16.msra.mxu0 %v1711
    %1765 = vmatprep.subr.bf16.mxu0 0
    %1766 = vmatpush2.bf16.msra.mxu0 %v1710
    %1767 = vmatprep.subr.bf16.mxu0 0
    %1768 = vmatpush2.bf16.msra.mxu0 %v1709
    %1769 = vmatprep.subr.bf16.mxu0 0
    %1770 = vmatpush2.bf16.msra.mxu0 %v1708
    %1771 = vmatprep.subr.bf16.mxu0 0
    %1772 = vmatpush2.bf16.msra.mxu0 %v1707
    %1773 = vmatprep.subr.bf16.mxu0 0
    %1774 = vmatpush2.bf16.msra.mxu0 %v1706
    %1775 = vmatprep.subr.bf16.mxu0 0
    %1776 = vmatpush2.bf16.msra.mxu0 %v1705
    %1777 = vmatprep.mubr.bf16.mxu0 %v1544
    %1778 = vmatmul.mubr.bf16.gmra.mxu0 %v1543
    %v1779 = vpop.f32.mrf.mxu0
    %v1780 = vadd.f32 %v1599, %v1779
    %v1781 = vpop.f32.mrf.mxu0
    %v1782 = vpop.f32.mrf.mxu0
    %v1783 = vpop.f32.mrf.mxu0
    %1784 = vdwg.mxu0
    %1785 = vmatprep.subr.bf16.mxu0 0
    %1786 = vmatpush1.bf16.msra.mxu0 %v1720
    %1787 = vmatprep.subr.bf16.mxu0 0
    %1788 = vmatpush1.bf16.msra.mxu0 %v1719
    %1789 = vmatprep.subr.bf16.mxu0 0
    %1790 = vmatpush1.bf16.msra.mxu0 %v1718
    %1791 = vmatprep.subr.bf16.mxu0 0
    %1792 = vmatpush1.bf16.msra.mxu0 %v1717
    %1793 = vmatprep.subr.bf16.mxu0 0
    %1794 = vmatpush1.bf16.msra.mxu0 %v1716
    %1795 = vmatprep.subr.bf16.mxu0 0
    %1796 = vmatpush1.bf16.msra.mxu0 %v1715
    %1797 = vmatprep.subr.bf16.mxu0 0
    %1798 = vmatpush1.bf16.msra.mxu0 %v1714
    %1799 = vmatprep.subr.bf16.mxu0 0
    %1800 = vmatpush1.bf16.msra.mxu0 %v1713
    %1801 = vmatprep.subr.bf16.mxu0 0
    %1802 = vmatpush2.bf16.msra.mxu0 0
    %1803 = vmatprep.subr.bf16.mxu0 0
    %1804 = vmatpush2.bf16.msra.mxu0 0
    %1805 = vmatprep.subr.bf16.mxu0 0
    %1806 = vmatpush2.bf16.msra.mxu0 0
    %1807 = vmatprep.subr.bf16.mxu0 0
    %1808 = vmatpush2.bf16.msra.mxu0 0
    %1809 = vmatprep.subr.bf16.mxu0 0
    %1810 = vmatpush2.bf16.msra.mxu0 0
    %1811 = vmatprep.subr.bf16.mxu0 0
    %1812 = vmatpush2.bf16.msra.mxu0 0
    %1813 = vmatprep.subr.bf16.mxu0 0
    %1814 = vmatpush2.bf16.msra.mxu0 0
    %1815 = vmatprep.subr.bf16.mxu0 0
    %1816 = vmatpush2.bf16.msra.mxu0 0
    %1817 = vmatprep.mubr.bf16.mxu0 0
    %1818 = vmatmul.mubr.bf16.gmra.mxu0 %v1545
    %v1819 = vpop.f32.mrf.mxu0
    %v1820 = vadd.f32 %v1780, %v1819
    %v1821 = vpop.f32.mrf.mxu0
    %v1822 = vpop.f32.mrf.mxu0
    %v1823 = vpop.f32.mrf.mxu0
    %1824 = vdwg.mxu0
    %v1825 = vpack.c.bf16 %v1820, %v1820
    %1826 = vst [vmem:[%s9] sm:$0xf] %v1825
    // Predicated region
    $region54: #{policy_forward.1} parent=1 // pred_check
      _
    $region55: #{policy_forward.1} parent=1 // pred_check_branch
      %1828 = sbr.rel (0) target = $region57
    $region56: #{policy_forward.1} parent=1 // pred_region
      _
    $region57: #{policy_forward.1} parent=1 // pred_fallthru
      _
    // Predicated region
    $region58: #{policy_forward.1} parent=1 // pred_check
      _
    $region59: #{policy_forward.1} parent=1 // pred_check_branch
      %1830 = sbr.rel (0) target = $region61
    $region60: #{policy_forward.1} parent=1 // pred_region
      _
    $region61: #{policy_forward.1} parent=1 // pred_fallthru
      _
    %1831 = vsyncpa [#allocation3], 1
    %1832 = vsyncpa [#allocation5], 1
    %1833 = vsyncpa [#allocation8], 1

</llo_original>
